<compile_context>
chip_gen: v7x
topology: tpu7x:2x2x1
jax: 0.10.0
libtpu: 0.0.40
codegen_flags: <defaults>
</compile_context>

<pallas_src>
import functools

import jax
import jax.numpy as jnp
from jax.experimental import pallas as pl
from jax.experimental.pallas import tpu as pltpu


# ----------------------------- config ---------------------------------------
CONFIG = {
    "dataset_highest_number": 16,   # onehot_width V
    "model_hidden_width": 32,       # H  (3H = 96 real features)
    "model_hidden_layers": 2,       # L
    "activation": "tanh",
}

BLOCK_ROWS = 128                    # batch tile (full MXU row pass)


def _round_up(x, m):
    return ((x + m - 1) // m) * m


# ----------------------------- kernel ---------------------------------------
def neural_arithmetic_kernel(idx_ref, we_ref, w1_ref, b1_ref, w2_ref, b2_ref,
                             w3_ref, b3_ref, out_ref, *, activation, onehot_width):
    BM = out_ref.shape[0]
    IN_P = we_ref.shape[0]          # padded one-hot width (>= 3V), lane-dense
    L = w2_ref.shape[0]
    V = onehot_width

    if activation == "tanh":
        act = jnp.tanh
    else:
        act = lambda v: jnp.where(v >= 0, v, 0.01 * v)   # LeakyReLU default slope

    # Fused one-hot for all three operands along the lane axis: [BM, IN_P].
    lane = jax.lax.broadcasted_iota(jnp.int32, (BM, IN_P), 1)
    idx = idx_ref[...]
    oh = ((lane == idx[:, 0:1])
          | (lane == idx[:, 1:2] + V)
          | (lane == idx[:, 2:3] + 2 * V)).astype(jnp.bfloat16)

    # Fused embed(+bias) + concat: one bf16 MXU pass against the block-diag matrix.
    h = jnp.dot(oh, we_ref[...], preferred_element_type=jnp.float32)

    def linear(x, w, b):
        return jnp.dot(x.astype(jnp.bfloat16), w,
                       preferred_element_type=jnp.float32) + b

    # ff1 + act1
    h = act(linear(h, w1_ref[...], b1_ref[...]))

    # ff2: L x (Linear + act)
    for l in range(L):
        h = act(linear(h, w2_ref[l], b2_ref[l]))

    # ff3: L x Linear, activation after all but the last linear
    for l in range(L):
        h = linear(h, w3_ref[l], b3_ref[l])
        if l < L - 1:
            h = act(h)

    out_ref[...] = h.astype(out_ref.dtype)


# ----------------------------- param prep ------------------------------------
def prepare_kernel_params(params):
    """Pad to lane-dense 128-wide tiles, fold embed bias, build block-diag, cast bf16."""
    we, be = params["we"], params["be"]
    V, H = we.shape
    F = 3 * H
    L = params["w2"].shape[0]
    IN_P = _round_up(3 * V, 128)
    FP = _round_up(F, 128)

    we_plus = we + be                                   # fold bias into weight
    we_blk = jnp.zeros((IN_P, FP), jnp.float32)
    for i in range(3):
        we_blk = we_blk.at[i * V:(i + 1) * V, i * H:(i + 1) * H].set(we_plus)

    def pad_w(w):                                       # [F,F] -> [FP,FP]
        return jnp.zeros((FP, FP), jnp.float32).at[:F, :F].set(w)

    def pad_b(b):                                       # [1,F] -> [1,FP]
        return jnp.zeros((1, FP), jnp.float32).at[:, :F].set(b)

    return {
        "we": we_blk.astype(jnp.bfloat16),
        "w1": pad_w(params["w1"]).astype(jnp.bfloat16),
        "b1": pad_b(params["b1"]),
        "w2": jnp.stack([pad_w(params["w2"][l]) for l in range(L)]).astype(jnp.bfloat16),
        "b2": jnp.stack([pad_b(params["b2"][l]) for l in range(L)]),
        "w3": jnp.stack([pad_w(params["w3"][l]) for l in range(L)]).astype(jnp.bfloat16),
        "b3": jnp.stack([pad_b(params["b3"][l]) for l in range(L)]),
    }


# ----------------------------- wrapper ---------------------------------------
def neural_arithmetic_forward(idx, kparams, *, activation, onehot_width,
                              out_features, block_rows=BLOCK_ROWS):
    B = idx.shape[0]
    BM = block_rows
    Bp = _round_up(B, BM)
    if Bp != B:
        idx = jnp.pad(idx, ((0, Bp - B), (0, 0)))       # pad rows with class 0

    IN_P, FP = kparams["we"].shape
    L = kparams["w2"].shape[0]

    kernel = functools.partial(neural_arithmetic_kernel,
                               activation=activation, onehot_width=onehot_width)

    num_mm = 2 + 2 * L
    weight_bytes = 2 * (IN_P * FP + (1 + 2 * L) * FP * FP) + 4 * (1 + 2 * L) * FP
    cost = pl.CostEstimate(
        flops=int(2 * Bp * FP * FP * num_mm),
        transcendentals=int(Bp * FP * 2 * L) if activation == "tanh" else 0,
        bytes_accessed=int(idx.size * 4 + Bp * FP * 4 + weight_bytes),
    )

    out = pl.pallas_call(
        kernel,
        out_shape=jax.ShapeDtypeStruct((Bp, FP), jnp.float32),
        grid=(Bp // BM,),
        in_specs=[
            pl.BlockSpec((BM, 3), lambda i: (i, 0)),           # idx: per-block rows
            pl.BlockSpec((IN_P, FP), lambda i: (0, 0)),        # weights: resident
            pl.BlockSpec((FP, FP), lambda i: (0, 0)),
            pl.BlockSpec((1, FP), lambda i: (0, 0)),
            pl.BlockSpec((L, FP, FP), lambda i: (0, 0, 0)),
            pl.BlockSpec((L, 1, FP), lambda i: (0, 0, 0)),
            pl.BlockSpec((L, FP, FP), lambda i: (0, 0, 0)),
            pl.BlockSpec((L, 1, FP), lambda i: (0, 0, 0)),
        ],
        out_specs=pl.BlockSpec((BM, FP), lambda i: (i, 0)),
        compiler_params=pltpu.CompilerParams(
            dimension_semantics=("parallel",)),                 # v7x: shard across TCs
        cost_estimate=cost,
    )(idx, kparams["we"], kparams["w1"], kparams["b1"],
      kparams["w2"], kparams["b2"], kparams["w3"], kparams["b3"])

    return out[:B, :out_features]


# ----------------------------- params & reference -----------------------------
def init_params(config, key):
    V = config["dataset_highest_number"]
    H = config["model_hidden_width"]
    L = config["model_hidden_layers"]
    F = 3 * H
    ks = jax.random.split(key, 8)
    # weights stored pre-transposed: [in, out]; biases kept 2D.
    return {
        "we": 0.1 * jax.random.normal(ks[0], (V, H), jnp.float32),
        "be": 0.1 * jax.random.normal(ks[1], (1, H), jnp.float32),
        "w1": 0.1 * jax.random.normal(ks[2], (F, F), jnp.float32),
        "b1": 0.1 * jax.random.normal(ks[3], (1, F), jnp.float32),
        "w2": 0.1 * jax.random.normal(ks[4], (L, F, F), jnp.float32),
        "b2": 0.1 * jax.random.normal(ks[5], (L, 1, F), jnp.float32),
        "w3": 0.1 * jax.random.normal(ks[6], (L, F, F), jnp.float32),
        "b3": 0.1 * jax.random.normal(ks[7], (L, 1, F), jnp.float32),
    }


def reference_forward(idx, params, *, activation):
    """Pure-JAX f32 mirror of the PyTorch forward, for correctness checking."""
    V = params["we"].shape[0]
    L = params["w2"].shape[0]
    act = jnp.tanh if activation == "tanh" else (lambda v: jnp.where(v >= 0, v, 0.01 * v))

    def embed(col):
        oh = jax.nn.one_hot(idx[:, col], V, dtype=jnp.float32)
        return oh @ params["we"] + params["be"]

    h = jnp.concatenate([embed(0), embed(1), embed(2)], axis=1)
    h = act(h @ params["w1"] + params["b1"])
    for l in range(L):
        h = act(h @ params["w2"][l] + params["b2"][l])
    for l in range(L):
        h = h @ params["w3"][l] + params["b3"][l]
        if l < L - 1:
            h = act(h)
    return h


# ----------------------------- main -------------------------------------------
if __name__ == "__main__":
    key = jax.random.PRNGKey(0)
    k_params, k_input = jax.random.split(key)

    params = init_params(CONFIG, k_params)
    kparams = prepare_kernel_params(params)

    B = 200                                  # exercises 2 grid blocks + row padding
    V = CONFIG["dataset_highest_number"]
    H = CONFIG["model_hidden_width"]
    idx = jax.random.randint(k_input, (B, 3), 0, V, dtype=jnp.int32)

    for activation in ("tanh", "leakyrelu"):
        out = neural_arithmetic_forward(
            idx, kparams, activation=activation, onehot_width=V, out_features=3 * H)
        out = jax.block_until_ready(out)

        ref = reference_forward(idx, params, activation=activation)
        assert out.shape == (B, 3 * H)
        # bf16 weights on the MXU: loosen tolerance vs the f32 reference.
        assert jnp.allclose(out, ref, atol=2e-2, rtol=2e-2), \
            f"mismatch vs reference ({activation})"

    print("KERNEL_OK")
</pallas_src>

<mosaic_0001>
module attributes {stable_mosaic.version = 11 : i64} {
  func.func @neural_arithmetic_kernel(%arg0: i32, %arg1: memref<128x3xi32, #tpu.memory_space<vmem>>, %arg2: memref<128x128xbf16, #tpu.memory_space<vmem>>, %arg3: memref<128x128xbf16, #tpu.memory_space<vmem>>, %arg4: memref<1x128xf32, #tpu.memory_space<vmem>>, %arg5: memref<2x128x128xbf16, #tpu.memory_space<vmem>>, %arg6: memref<2x1x128xf32, #tpu.memory_space<vmem>>, %arg7: memref<2x128x128xbf16, #tpu.memory_space<vmem>>, %arg8: memref<2x1x128xf32, #tpu.memory_space<vmem>>, %arg9: memref<128x128xf32, #tpu.memory_space<vmem>>) attributes {dimension_semantics = [#tpu.dimension_semantics<parallel>], iteration_bounds = array<i64: 2>, scalar_prefetch = 0 : i64, scratch_operands = 0 : i64, tpu.core_type = #tpu.core_type<tc>, window_params = [{transform_indices = @transform_0, window_bounds = array<i64: 128, 3>}, {pipeline_mode = #tpu.pipeline_mode<synchronous>, transform_indices = @transform_1, window_bounds = array<i64: 128, 128>}, {pipeline_mode = #tpu.pipeline_mode<synchronous>, transform_indices = @transform_2, window_bounds = array<i64: 128, 128>}, {pipeline_mode = #tpu.pipeline_mode<synchronous>, transform_indices = @transform_3, window_bounds = array<i64: 1, 128>}, {pipeline_mode = #tpu.pipeline_mode<synchronous>, transform_indices = @transform_4, window_bounds = array<i64: 2, 128, 128>}, {pipeline_mode = #tpu.pipeline_mode<synchronous>, transform_indices = @transform_5, window_bounds = array<i64: 2, 1, 128>}, {pipeline_mode = #tpu.pipeline_mode<synchronous>, transform_indices = @transform_6, window_bounds = array<i64: 2, 128, 128>}, {pipeline_mode = #tpu.pipeline_mode<synchronous>, transform_indices = @transform_7, window_bounds = array<i64: 2, 1, 128>}, {transform_indices = @transform_8, window_bounds = array<i64: 128, 128>}]} {
    %0 = tpu.iota {dimensions = array<i32: 1>} : vector<128x128xi32>
    %c0 = arith.constant 0 : index
    %c0_0 = arith.constant 0 : index
    %1 = vector.load %arg1[%c0, %c0_0] : memref<128x3xi32, #tpu.memory_space<vmem>>, vector<128x3xi32>
    %2 = vector.extract_strided_slice %1 {offsets = [0, 0], sizes = [128, 1], strides = [1, 1]} : vector<128x3xi32> to vector<128x1xi32>
    %3 = vector.broadcast %2 : vector<128x1xi32> to vector<128x128xi32>
    %4 = arith.cmpi eq, %0, %3 : vector<128x128xi32>
    %5 = vector.extract_strided_slice %1 {offsets = [0, 1], sizes = [128, 1], strides = [1, 1]} : vector<128x3xi32> to vector<128x1xi32>
    %c16_i32 = arith.constant 16 : i32
    %6 = vector.broadcast %c16_i32 : i32 to vector<128x1xi32>
    %7 = arith.addi %5, %6 : vector<128x1xi32>
    %8 = vector.broadcast %7 : vector<128x1xi32> to vector<128x128xi32>
    %9 = arith.cmpi eq, %0, %8 : vector<128x128xi32>
    %10 = arith.ori %4, %9 : vector<128x128xi1>
    %11 = vector.extract_strided_slice %1 {offsets = [0, 2], sizes = [128, 1], strides = [1, 1]} : vector<128x3xi32> to vector<128x1xi32>
    %c32_i32 = arith.constant 32 : i32
    %12 = vector.broadcast %c32_i32 : i32 to vector<128x1xi32>
    %13 = arith.addi %11, %12 : vector<128x1xi32>
    %14 = vector.broadcast %13 : vector<128x1xi32> to vector<128x128xi32>
    %15 = arith.cmpi eq, %0, %14 : vector<128x128xi32>
    %16 = arith.ori %10, %15 : vector<128x128xi1>
    %17 = arith.extui %16 : vector<128x128xi1> to vector<128x128xi32>
    %18 = arith.sitofp %17 : vector<128x128xi32> to vector<128x128xf32>
    %19 = arith.truncf %18 : vector<128x128xf32> to vector<128x128xbf16>
    %c0_1 = arith.constant 0 : index
    %c0_2 = arith.constant 0 : index
    %20 = vector.load %arg2[%c0_1, %c0_2] : memref<128x128xbf16, #tpu.memory_space<vmem>>, vector<128x128xbf16>
    %cst = arith.constant dense<0.000000e+00> : vector<128x128xf32>
    %21 = tpu.matmul %19, %20, %cst {dimension_numbers = #tpu.dot_dimension_numbers<[1], [0], [0], [1], [0, 0, 1, 1], [], []>} : vector<128x128xbf16>, vector<128x128xbf16>, vector<128x128xf32> -> vector<128x128xf32>
    %c0_3 = arith.constant 0 : index
    %c0_4 = arith.constant 0 : index
    %22 = vector.load %arg3[%c0_3, %c0_4] : memref<128x128xbf16, #tpu.memory_space<vmem>>, vector<128x128xbf16>
    %c0_5 = arith.constant 0 : index
    %c0_6 = arith.constant 0 : index
    %23 = vector.load %arg4[%c0_5, %c0_6] : memref<1x128xf32, #tpu.memory_space<vmem>>, vector<1x128xf32>
    %24 = arith.truncf %21 : vector<128x128xf32> to vector<128x128xbf16>
    %cst_7 = arith.constant dense<0.000000e+00> : vector<128x128xf32>
    %25 = tpu.matmul %24, %22, %cst_7 {dimension_numbers = #tpu.dot_dimension_numbers<[1], [0], [0], [1], [0, 0, 1, 1], [], []>} : vector<128x128xbf16>, vector<128x128xbf16>, vector<128x128xf32> -> vector<128x128xf32>
    %26 = vector.broadcast %23 : vector<1x128xf32> to vector<128x128xf32>
    %27 = arith.addf %25, %26 : vector<128x128xf32>
    %28 = math.tanh %27 : vector<128x128xf32>
    %c0_8 = arith.constant 0 : index
    %c0_9 = arith.constant 0 : index
    %c0_10 = arith.constant 0 : index
    %29 = vector.load %arg5[%c0_8, %c0_9, %c0_10] : memref<2x128x128xbf16, #tpu.memory_space<vmem>>, vector<1x128x128xbf16>
    %30 = vector.shape_cast %29 : vector<1x128x128xbf16> to vector<128x128xbf16>
    %c0_11 = arith.constant 0 : index
    %c0_12 = arith.constant 0 : index
    %c0_13 = arith.constant 0 : index
    %31 = vector.load %arg6[%c0_11, %c0_12, %c0_13] : memref<2x1x128xf32, #tpu.memory_space<vmem>>, vector<1x1x128xf32>
    %32 = vector.shape_cast %31 : vector<1x1x128xf32> to vector<1x128xf32>
    %33 = arith.truncf %28 : vector<128x128xf32> to vector<128x128xbf16>
    %cst_14 = arith.constant dense<0.000000e+00> : vector<128x128xf32>
    %34 = tpu.matmul %33, %30, %cst_14 {dimension_numbers = #tpu.dot_dimension_numbers<[1], [0], [0], [1], [0, 0, 1, 1], [], []>} : vector<128x128xbf16>, vector<128x128xbf16>, vector<128x128xf32> -> vector<128x128xf32>
    %35 = vector.broadcast %32 : vector<1x128xf32> to vector<128x128xf32>
    %36 = arith.addf %34, %35 : vector<128x128xf32>
    %37 = math.tanh %36 : vector<128x128xf32>
    %c1 = arith.constant 1 : index
    %c0_15 = arith.constant 0 : index
    %c0_16 = arith.constant 0 : index
    %38 = vector.load %arg5[%c1, %c0_15, %c0_16] : memref<2x128x128xbf16, #tpu.memory_space<vmem>>, vector<1x128x128xbf16>
    %39 = vector.shape_cast %38 : vector<1x128x128xbf16> to vector<128x128xbf16>
    %c1_17 = arith.constant 1 : index
    %c0_18 = arith.constant 0 : index
    %c0_19 = arith.constant 0 : index
    %40 = vector.load %arg6[%c1_17, %c0_18, %c0_19] : memref<2x1x128xf32, #tpu.memory_space<vmem>>, vector<1x1x128xf32>
    %41 = vector.shape_cast %40 : vector<1x1x128xf32> to vector<1x128xf32>
    %42 = arith.truncf %37 : vector<128x128xf32> to vector<128x128xbf16>
    %cst_20 = arith.constant dense<0.000000e+00> : vector<128x128xf32>
    %43 = tpu.matmul %42, %39, %cst_20 {dimension_numbers = #tpu.dot_dimension_numbers<[1], [0], [0], [1], [0, 0, 1, 1], [], []>} : vector<128x128xbf16>, vector<128x128xbf16>, vector<128x128xf32> -> vector<128x128xf32>
    %44 = vector.broadcast %41 : vector<1x128xf32> to vector<128x128xf32>
    %45 = arith.addf %43, %44 : vector<128x128xf32>
    %46 = math.tanh %45 : vector<128x128xf32>
    %c0_21 = arith.constant 0 : index
    %c0_22 = arith.constant 0 : index
    %c0_23 = arith.constant 0 : index
    %47 = vector.load %arg7[%c0_21, %c0_22, %c0_23] : memref<2x128x128xbf16, #tpu.memory_space<vmem>>, vector<1x128x128xbf16>
    %48 = vector.shape_cast %47 : vector<1x128x128xbf16> to vector<128x128xbf16>
    %c0_24 = arith.constant 0 : index
    %c0_25 = arith.constant 0 : index
    %c0_26 = arith.constant 0 : index
    %49 = vector.load %arg8[%c0_24, %c0_25, %c0_26] : memref<2x1x128xf32, #tpu.memory_space<vmem>>, vector<1x1x128xf32>
    %50 = vector.shape_cast %49 : vector<1x1x128xf32> to vector<1x128xf32>
    %51 = arith.truncf %46 : vector<128x128xf32> to vector<128x128xbf16>
    %cst_27 = arith.constant dense<0.000000e+00> : vector<128x128xf32>
    %52 = tpu.matmul %51, %48, %cst_27 {dimension_numbers = #tpu.dot_dimension_numbers<[1], [0], [0], [1], [0, 0, 1, 1], [], []>} : vector<128x128xbf16>, vector<128x128xbf16>, vector<128x128xf32> -> vector<128x128xf32>
    %53 = vector.broadcast %50 : vector<1x128xf32> to vector<128x128xf32>
    %54 = arith.addf %52, %53 : vector<128x128xf32>
    %55 = math.tanh %54 : vector<128x128xf32>
    %c1_28 = arith.constant 1 : index
    %c0_29 = arith.constant 0 : index
    %c0_30 = arith.constant 0 : index
    %56 = vector.load %arg7[%c1_28, %c0_29, %c0_30] : memref<2x128x128xbf16, #tpu.memory_space<vmem>>, vector<1x128x128xbf16>
    %57 = vector.shape_cast %56 : vector<1x128x128xbf16> to vector<128x128xbf16>
    %c1_31 = arith.constant 1 : index
    %c0_32 = arith.constant 0 : index
    %c0_33 = arith.constant 0 : index
    %58 = vector.load %arg8[%c1_31, %c0_32, %c0_33] : memref<2x1x128xf32, #tpu.memory_space<vmem>>, vector<1x1x128xf32>
    %59 = vector.shape_cast %58 : vector<1x1x128xf32> to vector<1x128xf32>
    %60 = arith.truncf %55 : vector<128x128xf32> to vector<128x128xbf16>
    %cst_34 = arith.constant dense<0.000000e+00> : vector<128x128xf32>
    %61 = tpu.matmul %60, %57, %cst_34 {dimension_numbers = #tpu.dot_dimension_numbers<[1], [0], [0], [1], [0, 0, 1, 1], [], []>} : vector<128x128xbf16>, vector<128x128xbf16>, vector<128x128xf32> -> vector<128x128xf32>
    %62 = vector.broadcast %59 : vector<1x128xf32> to vector<128x128xf32>
    %63 = arith.addf %61, %62 : vector<128x128xf32>
    %c0_35 = arith.constant 0 : index
    %c0_36 = arith.constant 0 : index
    %64 = vector.load %arg9[%c0_35, %c0_36] : memref<128x128xf32, #tpu.memory_space<vmem>>, vector<128x128xf32>
    tpu.vector_store %arg9[%c0_35, %c0_36], %63 {strides = array<i32>} : memref<128x128xf32, #tpu.memory_space<vmem>>, vector<128x128xf32>,
    return
  }
  func.func @transform_0(%arg0: i32) -> (i32, i32) {
    %c0_i32 = arith.constant 0 : i32
    %c0_i32_0 = arith.constant 0 : i32
    return %arg0, %c0_i32 : i32, i32
  }
  func.func @transform_1(%arg0: i32) -> (i32, i32) {
    %c0_i32 = arith.constant 0 : i32
    %c0_i32_0 = arith.constant 0 : i32
    %c0_i32_1 = arith.constant 0 : i32
    return %c0_i32, %c0_i32_0 : i32, i32
  }
  func.func @transform_2(%arg0: i32) -> (i32, i32) {
    %c0_i32 = arith.constant 0 : i32
    %c0_i32_0 = arith.constant 0 : i32
    %c0_i32_1 = arith.constant 0 : i32
    return %c0_i32, %c0_i32_0 : i32, i32
  }
  func.func @transform_3(%arg0: i32) -> (i32, i32) {
    %c0_i32 = arith.constant 0 : i32
    %c0_i32_0 = arith.constant 0 : i32
    %c0_i32_1 = arith.constant 0 : i32
    return %c0_i32, %c0_i32_0 : i32, i32
  }
  func.func @transform_4(%arg0: i32) -> (i32, i32, i32) {
    %c0_i32 = arith.constant 0 : i32
    %c0_i32_0 = arith.constant 0 : i32
    %c0_i32_1 = arith.constant 0 : i32
    %c0_i32_2 = arith.constant 0 : i32
    return %c0_i32, %c0_i32_0, %c0_i32_1 : i32, i32, i32
  }
  func.func @transform_5(%arg0: i32) -> (i32, i32, i32) {
    %c0_i32 = arith.constant 0 : i32
    %c0_i32_0 = arith.constant 0 : i32
    %c0_i32_1 = arith.constant 0 : i32
    %c0_i32_2 = arith.constant 0 : i32
    return %c0_i32, %c0_i32_0, %c0_i32_1 : i32, i32, i32
  }
  func.func @transform_6(%arg0: i32) -> (i32, i32, i32) {
    %c0_i32 = arith.constant 0 : i32
    %c0_i32_0 = arith.constant 0 : i32
    %c0_i32_1 = arith.constant 0 : i32
    %c0_i32_2 = arith.constant 0 : i32
    return %c0_i32, %c0_i32_0, %c0_i32_1 : i32, i32, i32
  }
  func.func @transform_7(%arg0: i32) -> (i32, i32, i32) {
    %c0_i32 = arith.constant 0 : i32
    %c0_i32_0 = arith.constant 0 : i32
    %c0_i32_1 = arith.constant 0 : i32
    %c0_i32_2 = arith.constant 0 : i32
    return %c0_i32, %c0_i32_0, %c0_i32_1 : i32, i32, i32
  }
  func.func @transform_8(%arg0: i32) -> (i32, i32) {
    %c0_i32 = arith.constant 0 : i32
    %c0_i32_0 = arith.constant 0 : i32
    return %arg0, %c0_i32 : i32, i32
  }
}

</mosaic_0001>

<llo_original>
// kernel: tpu_custom_call.1
$region0: #{tpu_custom_call.1}
  #allocation0 [shape = 'u32[]', space=smem, size = 0x4, offset = 0x4, fixed_abs, tag = 'smem constant byte address 0x4 - core index']
  #allocation1 [shape = 'u32[144,128]{1,0:T(1,128)}', space=vmem, size = 0x12000, scoped, tag = 'internal scratch']
  %s0 = inlined_call_operand.vmem [shape: s32[256,3], index: 0, kind: input, shape index: {}]
  %s1 = inlined_call_operand.hbm [shape: bf16[128,128], index: 1, kind: input, shape index: {}]
  %s2 = inlined_call_operand.hbm [shape: bf16[128,128], index: 2, kind: input, shape index: {}]
  %s3 = inlined_call_operand.vmem [shape: f32[1,128], index: 3, kind: input, shape index: {}]
  %s4 = inlined_call_operand.vmem [shape: bf16[2,128,128], index: 4, kind: input, shape index: {}]
  %s5 = inlined_call_operand.vmem [shape: f32[2,1,128], index: 5, kind: input, shape index: {}]
  %s6 = inlined_call_operand.vmem [shape: bf16[2,128,128], index: 6, kind: input, shape index: {}]
  %s7 = inlined_call_operand.vmem [shape: f32[2,1,128], index: 7, kind: input, shape index: {}]
  %s8 = inlined_call_operand.hbm [shape: f32[256,128], index: 8, kind: output, shape index: {}]
  %s9 = sld [smem:[#allocation0]]
  $region73: #{tpu_custom_call.1} parent=0
    _
  %s11 = ssub.s32 1, %s9
  %s12 = scalar_select 0, %s11, %s9
  $region1: #{tpu_custom_call.1} parent=0
    #allocation2 [shape = 'u8[32768]{0}', space=vmem, size = 0x8000, scoped, tag = 'input window, operand 1, single buffered']
    #allocation3 [shape = 's32[2]{0}', space=sflag, size = 0x8, scoped, tag = 'scoped memory for tpu_custom_call.1']
    #allocation4 [shape = 's32[2]{0}', space=sflag, size = 0x8, scoped, tag = 'scoped memory for tpu_custom_call.1']
    #allocation5 [shape = 'u8[32768]{0}', space=vmem, size = 0x8000, scoped, tag = 'input window, operand 2, single buffered']
    #allocation6 [shape = 's32[1]{0}', space=sflag, size = 0x4, scoped, tag = 'scoped memory for tpu_custom_call.1']
    #allocation7 [shape = 'u8[131072]{0}', space=vmem, size = 0x20000, scoped, tag = 'output window, operand 0']
    %13 = vsyncpa [#allocation3], 0
    %14 = vsyncpa [#allocation6], 0
    %15 = vsyncpa [#allocation4], 0
    %s16 = scalar_lea.sflag [#allocation4], 1
    %17 = vsyncpa %s16, 0
    loop: start=0, step=1, limit=4
    $region2: #{tpu_custom_call.1} parent=1 // loop_pre_header
      _
    $region3: #{tpu_custom_call.1} parent=1 // loop_header
      %s19 = sphi 0, %s23
      %p20 = scmp.ge.s32.totalorder %s19, 4
      %s29 = sphi 0, %s31
      %s32 = sphi 0, %s29
      %s33 = sphi 0, %s32
      %s49 = sphi 0, %s33
      %s53 = sphi 0, %s53
      %s55 = sphi 0, %s53
      %s56 = sphi 0, %s55
      %s70 = sphi 0, %s56
      %s74 = sphi 0, %s74
      %s76 = sphi 0, %s74
      %s77 = sphi 0, %s76
      %s91 = sphi 0, %s77
      %s95 = sphi 0, %s95
      %s97 = sphi 0, %s95
      %s98 = sphi 0, %s97
      %s112 = sphi 0, %s98
      %s116 = sphi 0, %s116
      %s118 = sphi 0, %s116
      %s119 = sphi 0, %s118
      %s133 = sphi 0, %s119
      %s137 = sphi 0, %s137
      %s139 = sphi 0, %s137
      %s140 = sphi 0, %s139
      %s154 = sphi 0, %s140
      %s158 = sphi 0, %s158
      %s160 = sphi 0, %s158
      %s161 = sphi 0, %s160
      %s175 = sphi 0, %s161
      %s179 = sphi 0, %s179
      %s181 = sphi 0, %s179
      %s182 = sphi 0, %s181
      %s196 = sphi 0, %s182
      %s202 = sphi 0, %s204
      %s205 = sphi 0, %s202
      %s206 = sphi 0, %s205
      %s222 = sphi 0, %s206
    $region4: #{tpu_custom_call.1} parent=1 // loop_header_branch
      %22 = sbr.rel (%p20) target = $region8
    $region5: #{tpu_custom_call.1} parent=1 // loop_body
      %s24 = ssub.s32 %s19, 1
      %s25 = ssub.s32 %s19, 2
      %s26 = sadd.s32 %s19, 1
      %s27 = ssub.s32 %s19, %s26
      %p28 = scmp.eq.s32.totalorder %s27, 0
      %s30 = sadd.s32 %s29, 1
      %s31 = scalar_select %p28, %s29, %s30
      %p34 = pneg %p28
      %p35 = scmp.eq.s32.totalorder %s19, 1
      %p36 = por %p34, %p35
      %p37 = scmp.ne.s32.totalorder %s29, %s32
      %p38 = scmp.eq.s32.totalorder %s19, 0
      %p39 = por %p37, %p38
      %p40 = scmp.ne.s32.totalorder %s29, %s32
      %p41 = scmp.eq.s32.totalorder %s24, 1
      %p42 = por %p40, %p41
      %p43 = scmp.ne.s32.totalorder %s32, %s33
      %p44 = scmp.eq.s32.totalorder %s24, 0
      %p45 = por %p43, %p44
      %p46 = scmp.ne.s32.totalorder %s32, %s33
      %p47 = scmp.eq.s32.totalorder %s25, 1
      %p48 = por %p46, %p47
      %p50 = scmp.ne.s32.totalorder %s33, %s49
      %p51 = scmp.eq.s32.totalorder %s25, 0
      %p52 = por %p50, %p51
      %s54 = sadd.s32 %s53, 1
      %p57 = scmp.eq.s32.totalorder %s19, 1
      %p58 = scmp.ne.s32.totalorder %s53, %s55
      %p59 = scmp.eq.s32.totalorder %s19, 0
      %p60 = por %p58, %p59
      %p61 = scmp.ne.s32.totalorder %s53, %s55
      %p62 = scmp.eq.s32.totalorder %s24, 1
      %p63 = por %p61, %p62
      %p64 = scmp.ne.s32.totalorder %s55, %s56
      %p65 = scmp.eq.s32.totalorder %s24, 0
      %p66 = por %p64, %p65
      %p67 = scmp.ne.s32.totalorder %s55, %s56
      %p68 = scmp.eq.s32.totalorder %s25, 1
      %p69 = por %p67, %p68
      %p71 = scmp.ne.s32.totalorder %s56, %s70
      %p72 = scmp.eq.s32.totalorder %s25, 0
      %p73 = por %p71, %p72
      %s75 = sadd.s32 %s74, 1
      %p78 = scmp.eq.s32.totalorder %s19, 1
      %p79 = scmp.ne.s32.totalorder %s74, %s76
      %p80 = scmp.eq.s32.totalorder %s19, 0
      %p81 = por %p79, %p80
      %p82 = scmp.ne.s32.totalorder %s74, %s76
      %p83 = scmp.eq.s32.totalorder %s24, 1
      %p84 = por %p82, %p83
      %p85 = scmp.ne.s32.totalorder %s76, %s77
      %p86 = scmp.eq.s32.totalorder %s24, 0
      %p87 = por %p85, %p86
      %p88 = scmp.ne.s32.totalorder %s76, %s77
      %p89 = scmp.eq.s32.totalorder %s25, 1
      %p90 = por %p88, %p89
      %p92 = scmp.ne.s32.totalorder %s77, %s91
      %p93 = scmp.eq.s32.totalorder %s25, 0
      %p94 = por %p92, %p93
      %s96 = sadd.s32 %s95, 1
      %p99 = scmp.eq.s32.totalorder %s19, 1
      %p100 = scmp.ne.s32.totalorder %s95, %s97
      %p101 = scmp.eq.s32.totalorder %s19, 0
      %p102 = por %p100, %p101
      %p103 = scmp.ne.s32.totalorder %s95, %s97
      %p104 = scmp.eq.s32.totalorder %s24, 1
      %p105 = por %p103, %p104
      %p106 = scmp.ne.s32.totalorder %s97, %s98
      %p107 = scmp.eq.s32.totalorder %s24, 0
      %p108 = por %p106, %p107
      %p109 = scmp.ne.s32.totalorder %s97, %s98
      %p110 = scmp.eq.s32.totalorder %s25, 1
      %p111 = por %p109, %p110
      %p113 = scmp.ne.s32.totalorder %s98, %s112
      %p114 = scmp.eq.s32.totalorder %s25, 0
      %p115 = por %p113, %p114
      %s117 = sadd.s32 %s116, 1
      %p120 = scmp.eq.s32.totalorder %s19, 1
      %p121 = scmp.ne.s32.totalorder %s116, %s118
      %p122 = scmp.eq.s32.totalorder %s19, 0
      %p123 = por %p121, %p122
      %p124 = scmp.ne.s32.totalorder %s116, %s118
      %p125 = scmp.eq.s32.totalorder %s24, 1
      %p126 = por %p124, %p125
      %p127 = scmp.ne.s32.totalorder %s118, %s119
      %p128 = scmp.eq.s32.totalorder %s24, 0
      %p129 = por %p127, %p128
      %p130 = scmp.ne.s32.totalorder %s118, %s119
      %p131 = scmp.eq.s32.totalorder %s25, 1
      %p132 = por %p130, %p131
      %p134 = scmp.ne.s32.totalorder %s119, %s133
      %p135 = scmp.eq.s32.totalorder %s25, 0
      %p136 = por %p134, %p135
      %s138 = sadd.s32 %s137, 1
      %p141 = scmp.eq.s32.totalorder %s19, 1
      %p142 = scmp.ne.s32.totalorder %s137, %s139
      %p143 = scmp.eq.s32.totalorder %s19, 0
      %p144 = por %p142, %p143
      %p145 = scmp.ne.s32.totalorder %s137, %s139
      %p146 = scmp.eq.s32.totalorder %s24, 1
      %p147 = por %p145, %p146
      %p148 = scmp.ne.s32.totalorder %s139, %s140
      %p149 = scmp.eq.s32.totalorder %s24, 0
      %p150 = por %p148, %p149
      %p151 = scmp.ne.s32.totalorder %s139, %s140
      %p152 = scmp.eq.s32.totalorder %s25, 1
      %p153 = por %p151, %p152
      %p155 = scmp.ne.s32.totalorder %s140, %s154
      %p156 = scmp.eq.s32.totalorder %s25, 0
      %p157 = por %p155, %p156
      %s159 = sadd.s32 %s158, 1
      %p162 = scmp.eq.s32.totalorder %s19, 1
      %p163 = scmp.ne.s32.totalorder %s158, %s160
      %p164 = scmp.eq.s32.totalorder %s19, 0
      %p165 = por %p163, %p164
      %p166 = scmp.ne.s32.totalorder %s158, %s160
      %p167 = scmp.eq.s32.totalorder %s24, 1
      %p168 = por %p166, %p167
      %p169 = scmp.ne.s32.totalorder %s160, %s161
      %p170 = scmp.eq.s32.totalorder %s24, 0
      %p171 = por %p169, %p170
      %p172 = scmp.ne.s32.totalorder %s160, %s161
      %p173 = scmp.eq.s32.totalorder %s25, 1
      %p174 = por %p172, %p173
      %p176 = scmp.ne.s32.totalorder %s161, %s175
      %p177 = scmp.eq.s32.totalorder %s25, 0
      %p178 = por %p176, %p177
      %s180 = sadd.s32 %s179, 1
      %p183 = scmp.eq.s32.totalorder %s19, 1
      %p184 = scmp.ne.s32.totalorder %s179, %s181
      %p185 = scmp.eq.s32.totalorder %s19, 0
      %p186 = por %p184, %p185
      %p187 = scmp.ne.s32.totalorder %s179, %s181
      %p188 = scmp.eq.s32.totalorder %s24, 1
      %p189 = por %p187, %p188
      %p190 = scmp.ne.s32.totalorder %s181, %s182
      %p191 = scmp.eq.s32.totalorder %s24, 0
      %p192 = por %p190, %p191
      %p193 = scmp.ne.s32.totalorder %s181, %s182
      %p194 = scmp.eq.s32.totalorder %s25, 1
      %p195 = por %p193, %p194
      %p197 = scmp.ne.s32.totalorder %s182, %s196
      %p198 = scmp.eq.s32.totalorder %s25, 0
      %p199 = por %p197, %p198
      %s200 = ssub.s32 %s19, %s26
      %p201 = scmp.eq.s32.totalorder %s200, 0
      %s203 = sadd.s32 %s202, 1
      %s204 = scalar_select %p201, %s202, %s203
      %p207 = pneg %p201
      %p208 = scmp.eq.s32.totalorder %s19, 1
      %p209 = por %p207, %p208
      %p210 = scmp.ne.s32.totalorder %s202, %s205
      %p211 = scmp.eq.s32.totalorder %s19, 0
      %p212 = por %p210, %p211
      %p213 = scmp.ne.s32.totalorder %s202, %s205
      %p214 = scmp.eq.s32.totalorder %s24, 1
      %p215 = por %p213, %p214
      %p216 = scmp.ne.s32.totalorder %s205, %s206
      %p217 = scmp.eq.s32.totalorder %s24, 0
      %p218 = por %p216, %p217
      %p219 = scmp.ne.s32.totalorder %s205, %s206
      %p220 = scmp.eq.s32.totalorder %s25, 1
      %p221 = por %p219, %p220
      %p223 = scmp.ne.s32.totalorder %s206, %s222
      %p224 = scmp.eq.s32.totalorder %s25, 0
      %p225 = por %p223, %p224
      %p226 = scmp.le.s32.totalorder 1, %s19
      %p227 = scmp.lt.s32.totalorder %s19, 3
      %p228 = pnand %p226, %p227
      %p229 = pneg %p228
      // Predicated region
      $region9: #{tpu_custom_call.1} parent=5 // pred_check
        _
      $region10: #{tpu_custom_call.1} parent=5 // pred_check_branch
        %231 = sbr.rel (%p228) target = $region12
      $region11: #{tpu_custom_call.1} parent=5 // pred_region
        %s232 = ssub.s32 %s19, 1
        // Predicated region
        $region13: #{tpu_custom_call.1} parent=11 // pred_check
          %p233 = pneg %p66
        $region14: #{tpu_custom_call.1} parent=11 // pred_check_branch
          %235 = sbr.rel (%p233) target = $region16
        $region15: #{tpu_custom_call.1} parent=11 // pred_region
          %s237 = ssub.s32 1024, 1024
          %238 = vsyncadd [#allocation3], %s237
          %s239 = sshll.u32 [#allocation2], 4
          %s240 = int_to_ptr.vmem [resolvable:$true] %s239
          %245 = dma.hbm_to_vmem [thread:$0]  %s1, 1024, %s240, [#allocation3], 64, 64, 4
        $region16: #{tpu_custom_call.1} parent=11 // pred_fallthru
          _
        // Predicated region
        $region17: #{tpu_custom_call.1} parent=11 // pred_check
          %p246 = pneg %p87
        $region18: #{tpu_custom_call.1} parent=11 // pred_check_branch
          %248 = sbr.rel (%p246) target = $region20
        $region19: #{tpu_custom_call.1} parent=11 // pred_region
          %s250 = ssub.s32 1024, 1024
          %251 = vsyncadd [#allocation6], %s250
          %s252 = sshll.u32 [#allocation5], 4
          %s253 = int_to_ptr.vmem [resolvable:$true] %s252
          %258 = dma.hbm_to_vmem [thread:$0]  %s2, 1024, %s253, [#allocation6], 64, 64, 4
        $region20: #{tpu_custom_call.1} parent=11 // pred_fallthru
          _
        // Predicated region
        $region21: #{tpu_custom_call.1} parent=11 // pred_check
          %p259 = pneg %p108
        $region22: #{tpu_custom_call.1} parent=11 // pred_check_branch
          %261 = sbr.rel (%p259) target = $region24
        $region23: #{tpu_custom_call.1} parent=11 // pred_region
          _
        $region24: #{tpu_custom_call.1} parent=11 // pred_fallthru
          _
        // Predicated region
        $region25: #{tpu_custom_call.1} parent=11 // pred_check
          %p262 = pneg %p129
        $region26: #{tpu_custom_call.1} parent=11 // pred_check_branch
          %264 = sbr.rel (%p262) target = $region28
        $region27: #{tpu_custom_call.1} parent=11 // pred_region
          _
        $region28: #{tpu_custom_call.1} parent=11 // pred_fallthru
          _
        // Predicated region
        $region29: #{tpu_custom_call.1} parent=11 // pred_check
          %p265 = pneg %p150
        $region30: #{tpu_custom_call.1} parent=11 // pred_check_branch
          %267 = sbr.rel (%p265) target = $region32
        $region31: #{tpu_custom_call.1} parent=11 // pred_region
          _
        $region32: #{tpu_custom_call.1} parent=11 // pred_fallthru
          _
        // Predicated region
        $region33: #{tpu_custom_call.1} parent=11 // pred_check
          %p268 = pneg %p171
        $region34: #{tpu_custom_call.1} parent=11 // pred_check_branch
          %270 = sbr.rel (%p268) target = $region36
        $region35: #{tpu_custom_call.1} parent=11 // pred_region
          _
        $region36: #{tpu_custom_call.1} parent=11 // pred_fallthru
          _
        // Predicated region
        $region37: #{tpu_custom_call.1} parent=11 // pred_check
          %p271 = pneg %p192
        $region38: #{tpu_custom_call.1} parent=11 // pred_check_branch
          %273 = sbr.rel (%p271) target = $region40
        $region39: #{tpu_custom_call.1} parent=11 // pred_region
          _
        $region40: #{tpu_custom_call.1} parent=11 // pred_fallthru
          _
      $region12: #{tpu_custom_call.1} parent=5 // pred_fallthru
        _
      %p274 = scmp.lt.s32.totalorder %s19, 2
      // Predicated region
      $region41: #{tpu_custom_call.1} parent=5 // pred_check
        %p275 = pneg %p274
      $region42: #{tpu_custom_call.1} parent=5 // pred_check_branch
        %277 = sbr.rel (%p275) target = $region44
      $region43: #{tpu_custom_call.1} parent=5 // pred_region
        // Predicated region
        $region45: #{tpu_custom_call.1} parent=43 // pred_check
          %p278 = pneg %p39
        $region46: #{tpu_custom_call.1} parent=43 // pred_check_branch
          %280 = sbr.rel (%p278) target = $region48
        $region47: #{tpu_custom_call.1} parent=43 // pred_region
          %s281 = smul.u32 16, %s19
          %p282 = scmp.lt.s32.totalorder %s281, 31
          %s283 = scalar_select %p282, %s281, 31
          %s284 = smul.addr %s283, 8
          %s285 = scalar_lea.vmem %s0, %s284
          %s286 = smul.u32 16, %s19
        $region48: #{tpu_custom_call.1} parent=43 // pred_fallthru
          _
      $region44: #{tpu_custom_call.1} parent=5 // pred_fallthru
        _
      %p287 = scmp.le.s32.totalorder 1, %s19
      %p288 = scmp.lt.s32.totalorder %s19, 3
      %p289 = pnand %p287, %p288
      %p290 = pneg %p289
      // Predicated region
      $region49: #{tpu_custom_call.1} parent=5 // pred_check
        _
      $region50: #{tpu_custom_call.1} parent=5 // pred_check_branch
        %292 = sbr.rel (%p289) target = $region52
      $region51: #{tpu_custom_call.1} parent=5 // pred_region
        %s293 = ssub.s32 %s19, 1
        // Predicated region
        $region53: #{tpu_custom_call.1} parent=51 // pred_check
          %p294 = pneg %p66
        $region54: #{tpu_custom_call.1} parent=51 // pred_check_branch
          %296 = sbr.rel (%p294) target = $region56
        $region55: #{tpu_custom_call.1} parent=51 // pred_region
          %297 = dma.done [#allocation3], 1024
        $region56: #{tpu_custom_call.1} parent=51 // pred_fallthru
          _
        // Predicated region
        $region57: #{tpu_custom_call.1} parent=51 // pred_check
          %p298 = pneg %p87
        $region58: #{tpu_custom_call.1} parent=51 // pred_check_branch
          %300 = sbr.rel (%p298) target = $region60
        $region59: #{tpu_custom_call.1} parent=51 // pred_region
          %301 = dma.done [#allocation6], 1024
        $region60: #{tpu_custom_call.1} parent=51 // pred_fallthru
          _
        %s302 = smul.u32 16, %s24
        %p303 = scmp.lt.s32.totalorder %s302, 31
        %s304 = scalar_select %p303, %s302, 31
        %s305 = smul.addr %s304, 8
        %s306 = scalar_lea.vmem %s0, %s305
        %p307 = pneg %p45
        %p308 = pneg %p42
        %p309 = pneg %p66
        %p310 = pneg %p63
        %p311 = pneg %p87
        %p312 = pneg %p84
        %p313 = pneg %p108
        %p314 = pneg %p105
        %p315 = pneg %p129
        %p316 = pneg %p126
        %p317 = pneg %p150
        %p318 = pneg %p147
        %p319 = pneg %p171
        %p320 = pneg %p168
        %p321 = pneg %p192
        %p322 = pneg %p189
        %p323 = pneg %p218
        %p324 = pneg %p215
        %s325 = sand.u32 %s205, 1
        %s326 = scalar_lea.sflag [#allocation4], %s325
        %s327 = sand.u32 %s205, 1
        %s328 = smul.addr %s327, 128
        %s329 = scalar_lea.vmem [#allocation7], %s328
        %s330 = smul.u32 16, %s24
        %p331 = scmp.lt.s32.totalorder %s330, 31
        %s332 = scalar_select %p331, %s330, 31
        %s333 = smul.addr %s332, 8
        %s334 = scalar_lea.vmem %s0, %s333
        %s335 = smul.u32 16, %s24
        %s336 = smul.u32 16, %s24
        %v338 = vlaneseq
        %v339 = vand.u32 %v338, 127
        %v340 = vld [vmem:[%s334] sm:$0xff]
        %v341 = vld [vmem:[%s334 + $0x8] sm:$0xff]
        %v342 = vld [vmem:[%s334 + $0x10] sm:$0xff]
        %v343 = vld [vmem:[%s334 + $0x18] sm:$0xff]
        %v344 = vld [vmem:[%s334 + $0x20] sm:$0xff]
        %v345 = vld [vmem:[%s334 + $0x28] sm:$0xff]
        %v346 = vld [vmem:[%s334 + $0x30] sm:$0xff]
        %v347 = vld [vmem:[%s334 + $0x38] sm:$0xff]
        %v348 = vld [vmem:[%s334 + $0x40] sm:$0xff]
        %v349 = vld [vmem:[%s334 + $0x48] sm:$0xff]
        %v350 = vld [vmem:[%s334 + $0x50] sm:$0xff]
        %v351 = vld [vmem:[%s334 + $0x58] sm:$0xff]
        %v352 = vld [vmem:[%s334 + $0x60] sm:$0xff]
        %v353 = vld [vmem:[%s334 + $0x68] sm:$0xff]
        %v354 = vld [vmem:[%s334 + $0x70] sm:$0xff]
        %v355 = vld [vmem:[%s334 + $0x78] sm:$0xff]
        %356 = vset.pattern.permute.xlu0 0
        %357 = vperm.xlu0 %356, %v340
        %v358 = vpop.permute.xlu0 %357
        %359 = vset.pattern.permute.xlu0 0
        %360 = vperm.xlu0 %359, %v341
        %v361 = vpop.permute.xlu0 %360
        %362 = vset.pattern.permute.xlu0 0
        %363 = vperm.xlu0 %362, %v342
        %v364 = vpop.permute.xlu0 %363
        %365 = vset.pattern.permute.xlu0 0
        %366 = vperm.xlu0 %365, %v343
        %v367 = vpop.permute.xlu0 %366
        %368 = vset.pattern.permute.xlu0 0
        %369 = vperm.xlu0 %368, %v344
        %v370 = vpop.permute.xlu0 %369
        %371 = vset.pattern.permute.xlu0 0
        %372 = vperm.xlu0 %371, %v345
        %v373 = vpop.permute.xlu0 %372
        %374 = vset.pattern.permute.xlu0 0
        %375 = vperm.xlu0 %374, %v346
        %v376 = vpop.permute.xlu0 %375
        %377 = vset.pattern.permute.xlu0 0
        %378 = vperm.xlu0 %377, %v347
        %v379 = vpop.permute.xlu0 %378
        %380 = vset.pattern.permute.xlu0 0
        %381 = vperm.xlu0 %380, %v348
        %v382 = vpop.permute.xlu0 %381
        %383 = vset.pattern.permute.xlu0 0
        %384 = vperm.xlu0 %383, %v349
        %v385 = vpop.permute.xlu0 %384
        %386 = vset.pattern.permute.xlu0 0
        %387 = vperm.xlu0 %386, %v350
        %v388 = vpop.permute.xlu0 %387
        %389 = vset.pattern.permute.xlu0 0
        %390 = vperm.xlu0 %389, %v351
        %v391 = vpop.permute.xlu0 %390
        %392 = vset.pattern.permute.xlu0 0
        %393 = vperm.xlu0 %392, %v352
        %v394 = vpop.permute.xlu0 %393
        %395 = vset.pattern.permute.xlu0 0
        %396 = vperm.xlu0 %395, %v353
        %v397 = vpop.permute.xlu0 %396
        %398 = vset.pattern.permute.xlu0 0
        %399 = vperm.xlu0 %398, %v354
        %v400 = vpop.permute.xlu0 %399
        %401 = vset.pattern.permute.xlu0 0
        %402 = vperm.xlu0 %401, %v355
        %v403 = vpop.permute.xlu0 %402
        %vm404 = vcmp.eq.s32.totalorder %v339, %v358
        %vm405 = vcmp.eq.s32.totalorder %v339, %v361
        %vm406 = vcmp.eq.s32.totalorder %v339, %v364
        %vm407 = vcmp.eq.s32.totalorder %v339, %v367
        %vm408 = vcmp.eq.s32.totalorder %v339, %v370
        %vm409 = vcmp.eq.s32.totalorder %v339, %v373
        %vm410 = vcmp.eq.s32.totalorder %v339, %v376
        %vm411 = vcmp.eq.s32.totalorder %v339, %v379
        %vm412 = vcmp.eq.s32.totalorder %v339, %v382
        %vm413 = vcmp.eq.s32.totalorder %v339, %v385
        %vm414 = vcmp.eq.s32.totalorder %v339, %v388
        %vm415 = vcmp.eq.s32.totalorder %v339, %v391
        %vm416 = vcmp.eq.s32.totalorder %v339, %v394
        %vm417 = vcmp.eq.s32.totalorder %v339, %v397
        %vm418 = vcmp.eq.s32.totalorder %v339, %v400
        %vm419 = vcmp.eq.s32.totalorder %v339, %v403
        %v420 = vadd.s32 %v340, 16
        %v421 = vadd.s32 %v341, 16
        %v422 = vadd.s32 %v342, 16
        %v423 = vadd.s32 %v343, 16
        %v424 = vadd.s32 %v344, 16
        %v425 = vadd.s32 %v345, 16
        %v426 = vadd.s32 %v346, 16
        %v427 = vadd.s32 %v347, 16
        %v428 = vadd.s32 %v348, 16
        %v429 = vadd.s32 %v349, 16
        %v430 = vadd.s32 %v350, 16
        %v431 = vadd.s32 %v351, 16
        %v432 = vadd.s32 %v352, 16
        %v433 = vadd.s32 %v353, 16
        %v434 = vadd.s32 %v354, 16
        %v435 = vadd.s32 %v355, 16
        %436 = vset.pattern.permute.xlu0 1
        %437 = vperm.xlu0 %436, %v420
        %v438 = vpop.permute.xlu0 %437
        %439 = vset.pattern.permute.xlu0 1
        %440 = vperm.xlu0 %439, %v421
        %v441 = vpop.permute.xlu0 %440
        %442 = vset.pattern.permute.xlu0 1
        %443 = vperm.xlu0 %442, %v422
        %v444 = vpop.permute.xlu0 %443
        %445 = vset.pattern.permute.xlu0 1
        %446 = vperm.xlu0 %445, %v423
        %v447 = vpop.permute.xlu0 %446
        %448 = vset.pattern.permute.xlu0 1
        %449 = vperm.xlu0 %448, %v424
        %v450 = vpop.permute.xlu0 %449
        %451 = vset.pattern.permute.xlu0 1
        %452 = vperm.xlu0 %451, %v425
        %v453 = vpop.permute.xlu0 %452
        %454 = vset.pattern.permute.xlu0 1
        %455 = vperm.xlu0 %454, %v426
        %v456 = vpop.permute.xlu0 %455
        %457 = vset.pattern.permute.xlu0 1
        %458 = vperm.xlu0 %457, %v427
        %v459 = vpop.permute.xlu0 %458
        %460 = vset.pattern.permute.xlu0 1
        %461 = vperm.xlu0 %460, %v428
        %v462 = vpop.permute.xlu0 %461
        %463 = vset.pattern.permute.xlu0 1
        %464 = vperm.xlu0 %463, %v429
        %v465 = vpop.permute.xlu0 %464
        %466 = vset.pattern.permute.xlu0 1
        %467 = vperm.xlu0 %466, %v430
        %v468 = vpop.permute.xlu0 %467
        %469 = vset.pattern.permute.xlu0 1
        %470 = vperm.xlu0 %469, %v431
        %v471 = vpop.permute.xlu0 %470
        %472 = vset.pattern.permute.xlu0 1
        %473 = vperm.xlu0 %472, %v432
        %v474 = vpop.permute.xlu0 %473
        %475 = vset.pattern.permute.xlu0 1
        %476 = vperm.xlu0 %475, %v433
        %v477 = vpop.permute.xlu0 %476
        %478 = vset.pattern.permute.xlu0 1
        %479 = vperm.xlu0 %478, %v434
        %v480 = vpop.permute.xlu0 %479
        %481 = vset.pattern.permute.xlu0 1
        %482 = vperm.xlu0 %481, %v435
        %v483 = vpop.permute.xlu0 %482
        %vm484 = vcmp.eq.s32.totalorder %v339, %v438
        %vm485 = vcmp.eq.s32.totalorder %v339, %v441
        %vm486 = vcmp.eq.s32.totalorder %v339, %v444
        %vm487 = vcmp.eq.s32.totalorder %v339, %v447
        %vm488 = vcmp.eq.s32.totalorder %v339, %v450
        %vm489 = vcmp.eq.s32.totalorder %v339, %v453
        %vm490 = vcmp.eq.s32.totalorder %v339, %v456
        %vm491 = vcmp.eq.s32.totalorder %v339, %v459
        %vm492 = vcmp.eq.s32.totalorder %v339, %v462
        %vm493 = vcmp.eq.s32.totalorder %v339, %v465
        %vm494 = vcmp.eq.s32.totalorder %v339, %v468
        %vm495 = vcmp.eq.s32.totalorder %v339, %v471
        %vm496 = vcmp.eq.s32.totalorder %v339, %v474
        %vm497 = vcmp.eq.s32.totalorder %v339, %v477
        %vm498 = vcmp.eq.s32.totalorder %v339, %v480
        %vm499 = vcmp.eq.s32.totalorder %v339, %v483
        %vm500 = vmor %vm404, %vm484
        %vm501 = vmor %vm405, %vm485
        %vm502 = vmor %vm406, %vm486
        %vm503 = vmor %vm407, %vm487
        %vm504 = vmor %vm408, %vm488
        %vm505 = vmor %vm409, %vm489
        %vm506 = vmor %vm410, %vm490
        %vm507 = vmor %vm411, %vm491
        %vm508 = vmor %vm412, %vm492
        %vm509 = vmor %vm413, %vm493
        %vm510 = vmor %vm414, %vm494
        %vm511 = vmor %vm415, %vm495
        %vm512 = vmor %vm416, %vm496
        %vm513 = vmor %vm417, %vm497
        %vm514 = vmor %vm418, %vm498
        %vm515 = vmor %vm419, %vm499
        %v516 = vadd.s32 %v340, 32
        %v517 = vadd.s32 %v341, 32
        %v518 = vadd.s32 %v342, 32
        %v519 = vadd.s32 %v343, 32
        %v520 = vadd.s32 %v344, 32
        %v521 = vadd.s32 %v345, 32
        %v522 = vadd.s32 %v346, 32
        %v523 = vadd.s32 %v347, 32
        %v524 = vadd.s32 %v348, 32
        %v525 = vadd.s32 %v349, 32
        %v526 = vadd.s32 %v350, 32
        %v527 = vadd.s32 %v351, 32
        %v528 = vadd.s32 %v352, 32
        %v529 = vadd.s32 %v353, 32
        %v530 = vadd.s32 %v354, 32
        %v531 = vadd.s32 %v355, 32
        %532 = vset.pattern.permute.xlu0 2
        %533 = vperm.xlu0 %532, %v516
        %v534 = vpop.permute.xlu0 %533
        %535 = vset.pattern.permute.xlu0 2
        %536 = vperm.xlu0 %535, %v517
        %v537 = vpop.permute.xlu0 %536
        %538 = vset.pattern.permute.xlu0 2
        %539 = vperm.xlu0 %538, %v518
        %v540 = vpop.permute.xlu0 %539
        %541 = vset.pattern.permute.xlu0 2
        %542 = vperm.xlu0 %541, %v519
        %v543 = vpop.permute.xlu0 %542
        %544 = vset.pattern.permute.xlu0 2
        %545 = vperm.xlu0 %544, %v520
        %v546 = vpop.permute.xlu0 %545
        %547 = vset.pattern.permute.xlu0 2
        %548 = vperm.xlu0 %547, %v521
        %v549 = vpop.permute.xlu0 %548
        %550 = vset.pattern.permute.xlu0 2
        %551 = vperm.xlu0 %550, %v522
        %v552 = vpop.permute.xlu0 %551
        %553 = vset.pattern.permute.xlu0 2
        %554 = vperm.xlu0 %553, %v523
        %v555 = vpop.permute.xlu0 %554
        %556 = vset.pattern.permute.xlu0 2
        %557 = vperm.xlu0 %556, %v524
        %v558 = vpop.permute.xlu0 %557
        %559 = vset.pattern.permute.xlu0 2
        %560 = vperm.xlu0 %559, %v525
        %v561 = vpop.permute.xlu0 %560
        %562 = vset.pattern.permute.xlu0 2
        %563 = vperm.xlu0 %562, %v526
        %v564 = vpop.permute.xlu0 %563
        %565 = vset.pattern.permute.xlu0 2
        %566 = vperm.xlu0 %565, %v527
        %v567 = vpop.permute.xlu0 %566
        %568 = vset.pattern.permute.xlu0 2
        %569 = vperm.xlu0 %568, %v528
        %v570 = vpop.permute.xlu0 %569
        %571 = vset.pattern.permute.xlu0 2
        %572 = vperm.xlu0 %571, %v529
        %v573 = vpop.permute.xlu0 %572
        %574 = vset.pattern.permute.xlu0 2
        %575 = vperm.xlu0 %574, %v530
        %v576 = vpop.permute.xlu0 %575
        %577 = vset.pattern.permute.xlu0 2
        %578 = vperm.xlu0 %577, %v531
        %v579 = vpop.permute.xlu0 %578
        %vm580 = vcmp.eq.s32.totalorder %v339, %v534
        %vm581 = vcmp.eq.s32.totalorder %v339, %v537
        %vm582 = vcmp.eq.s32.totalorder %v339, %v540
        %vm583 = vcmp.eq.s32.totalorder %v339, %v543
        %vm584 = vcmp.eq.s32.totalorder %v339, %v546
        %vm585 = vcmp.eq.s32.totalorder %v339, %v549
        %vm586 = vcmp.eq.s32.totalorder %v339, %v552
        %vm587 = vcmp.eq.s32.totalorder %v339, %v555
        %vm588 = vcmp.eq.s32.totalorder %v339, %v558
        %vm589 = vcmp.eq.s32.totalorder %v339, %v561
        %vm590 = vcmp.eq.s32.totalorder %v339, %v564
        %vm591 = vcmp.eq.s32.totalorder %v339, %v567
        %vm592 = vcmp.eq.s32.totalorder %v339, %v570
        %vm593 = vcmp.eq.s32.totalorder %v339, %v573
        %vm594 = vcmp.eq.s32.totalorder %v339, %v576
        %vm595 = vcmp.eq.s32.totalorder %v339, %v579
        %vm596 = vmor %vm500, %vm580
        %vm597 = vmor %vm501, %vm581
        %vm598 = vmor %vm502, %vm582
        %vm599 = vmor %vm503, %vm583
        %vm600 = vmor %vm504, %vm584
        %vm601 = vmor %vm505, %vm585
        %vm602 = vmor %vm506, %vm586
        %vm603 = vmor %vm507, %vm587
        %vm604 = vmor %vm508, %vm588
        %vm605 = vmor %vm509, %vm589
        %vm606 = vmor %vm510, %vm590
        %vm607 = vmor %vm511, %vm591
        %vm608 = vmor %vm512, %vm592
        %vm609 = vmor %vm513, %vm593
        %vm610 = vmor %vm514, %vm594
        %vm611 = vmor %vm515, %vm595
        %v612 = vsel %vm596, 1, 0
        %v613 = vsel %vm597, 1, 0
        %v614 = vsel %vm598, 1, 0
        %v615 = vsel %vm599, 1, 0
        %v616 = vsel %vm600, 1, 0
        %v617 = vsel %vm601, 1, 0
        %v618 = vsel %vm602, 1, 0
        %v619 = vsel %vm603, 1, 0
        %v620 = vsel %vm604, 1, 0
        %v621 = vsel %vm605, 1, 0
        %v622 = vsel %vm606, 1, 0
        %v623 = vsel %vm607, 1, 0
        %v624 = vsel %vm608, 1, 0
        %v625 = vsel %vm609, 1, 0
        %v626 = vsel %vm610, 1, 0
        %v627 = vsel %vm611, 1, 0
        %v628 = vcvt.s32.f32 %v612
        %v629 = vcvt.s32.f32 %v613
        %v630 = vcvt.s32.f32 %v614
        %v631 = vcvt.s32.f32 %v615
        %v632 = vcvt.s32.f32 %v616
        %v633 = vcvt.s32.f32 %v617
        %v634 = vcvt.s32.f32 %v618
        %v635 = vcvt.s32.f32 %v619
        %v636 = vcvt.s32.f32 %v620
        %v637 = vcvt.s32.f32 %v621
        %v638 = vcvt.s32.f32 %v622
        %v639 = vcvt.s32.f32 %v623
        %v640 = vcvt.s32.f32 %v624
        %v641 = vcvt.s32.f32 %v625
        %v642 = vcvt.s32.f32 %v626
        %v643 = vcvt.s32.f32 %v627
        %v644 = vpack.c.bf16 %v629, %v628
        %v645 = vpack.c.bf16 %v631, %v630
        %v646 = vpack.c.bf16 %v633, %v632
        %v647 = vpack.c.bf16 %v635, %v634
        %v648 = vpack.c.bf16 %v637, %v636
        %v649 = vpack.c.bf16 %v639, %v638
        %v650 = vpack.c.bf16 %v641, %v640
        %v651 = vpack.c.bf16 %v643, %v642
        %v652 = vld [vmem:[#allocation2] sm:$0xf]
        %v653 = vld [vmem:[#allocation2 + $0x4] sm:$0xf]
        %v654 = vld [vmem:[#allocation2 + $0x8] sm:$0xf]
        %v655 = vld [vmem:[#allocation2 + $0xc] sm:$0xf]
        %v656 = vld [vmem:[#allocation2 + $0x10] sm:$0xf]
        %v657 = vld [vmem:[#allocation2 + $0x14] sm:$0xf]
        %v658 = vld [vmem:[#allocation2 + $0x18] sm:$0xf]
        %v659 = vld [vmem:[#allocation2 + $0x1c] sm:$0xf]
        %v660 = vld [vmem:[#allocation2 + $0x20] sm:$0xf]
        %v661 = vld [vmem:[#allocation2 + $0x24] sm:$0xf]
        %v662 = vld [vmem:[#allocation2 + $0x28] sm:$0xf]
        %v663 = vld [vmem:[#allocation2 + $0x2c] sm:$0xf]
        %v664 = vld [vmem:[#allocation2 + $0x30] sm:$0xf]
        %v665 = vld [vmem:[#allocation2 + $0x34] sm:$0xf]
        %v666 = vld [vmem:[#allocation2 + $0x38] sm:$0xf]
        %v667 = vld [vmem:[#allocation2 + $0x3c] sm:$0xf]
        %v684 = vunpack.c.l.b16 %v652
        %v685 = vunpack.c.l.b16 %v653
        %v686 = vunpack.c.l.b16 %v654
        %v687 = vunpack.c.l.b16 %v655
        %v688 = vunpack.c.l.b16 %v656
        %v689 = vunpack.c.l.b16 %v657
        %v690 = vunpack.c.l.b16 %v658
        %v691 = vunpack.c.l.b16 %v659
        %v692 = vunpack.c.l.b16 %v660
        %v693 = vunpack.c.l.b16 %v661
        %v694 = vunpack.c.l.b16 %v662
        %v695 = vunpack.c.l.b16 %v663
        %v696 = vunpack.c.l.b16 %v664
        %v697 = vunpack.c.l.b16 %v665
        %v698 = vunpack.c.l.b16 %v666
        %v699 = vunpack.c.l.b16 %v667
        %v700 = vpack.c.b16 %v685, %v684
        %v701 = vpack.c.b16 %v687, %v686
        %v702 = vpack.c.b16 %v689, %v688
        %v703 = vpack.c.b16 %v691, %v690
        %v704 = vpack.c.b16 %v693, %v692
        %v705 = vpack.c.b16 %v695, %v694
        %v706 = vpack.c.b16 %v697, %v696
        %v707 = vpack.c.b16 %v699, %v698
        %716 = vmatprep.subr.bf16.mxu0 0
        %717 = vmatpush1.bf16.msra.mxu0 %v700
        %718 = vmatprep.subr.bf16.mxu0 0
        %719 = vmatpush1.bf16.msra.mxu0 %v701
        %720 = vmatprep.subr.bf16.mxu0 0
        %721 = vmatpush1.bf16.msra.mxu0 %v702
        %722 = vmatprep.subr.bf16.mxu0 0
        %723 = vmatpush1.bf16.msra.mxu0 %v703
        %724 = vmatprep.subr.bf16.mxu0 0
        %725 = vmatpush1.bf16.msra.mxu0 %v704
        %726 = vmatprep.subr.bf16.mxu0 0
        %727 = vmatpush1.bf16.msra.mxu0 %v705
        %728 = vmatprep.subr.bf16.mxu0 0
        %729 = vmatpush1.bf16.msra.mxu0 %v706
        %730 = vmatprep.subr.bf16.mxu0 0
        %731 = vmatpush1.bf16.msra.mxu0 %v707
        %732 = vmatprep.subr.bf16.mxu0 0
        %733 = vmatpush1.bf16.msra.mxu0 0
        %734 = vmatprep.subr.bf16.mxu0 0
        %735 = vmatpush1.bf16.msra.mxu0 0
        %736 = vmatprep.subr.bf16.mxu0 0
        %737 = vmatpush1.bf16.msra.mxu0 0
        %738 = vmatprep.subr.bf16.mxu0 0
        %739 = vmatpush1.bf16.msra.mxu0 0
        %740 = vmatprep.subr.bf16.mxu0 0
        %741 = vmatpush1.bf16.msra.mxu0 0
        %742 = vmatprep.subr.bf16.mxu0 0
        %743 = vmatpush1.bf16.msra.mxu0 0
        %744 = vmatprep.subr.bf16.mxu0 0
        %745 = vmatpush1.bf16.msra.mxu0 0
        %746 = vmatprep.subr.bf16.mxu0 0
        %747 = vmatpush1.bf16.msra.mxu0 0
        %748 = vmatprep.mubr.bf16.mxu0 0
        %749 = vmatmul.mubr.bf16.gmra.mrb[0].mxu0 %v644
        %v750 = vpop.f32.mrb[0].mxu0
        %v751 = vadd.f32 0.0, %v750
        %v752 = vpop.f32.mrb[0].mxu0
        %v753 = vpop.f32.mrb[0].mxu0
        %v754 = vadd.f32 0.0, %v753
        %v755 = vpop.f32.mrb[0].mxu0
        %756 = vmatprep.mubr.bf16.mxu0 0
        %757 = vmatmul.mubr.bf16.gmra.mrb[0].mxu0 %v645
        %v758 = vpop.f32.mrb[0].mxu0
        %v759 = vadd.f32 0.0, %v758
        %v760 = vpop.f32.mrb[0].mxu0
        %v761 = vpop.f32.mrb[0].mxu0
        %v762 = vadd.f32 0.0, %v761
        %v763 = vpop.f32.mrb[0].mxu0
        %764 = vmatprep.mubr.bf16.mxu0 0
        %765 = vmatmul.mubr.bf16.gmra.mrb[0].mxu0 %v646
        %v766 = vpop.f32.mrb[0].mxu0
        %v767 = vadd.f32 0.0, %v766
        %v768 = vpop.f32.mrb[0].mxu0
        %v769 = vpop.f32.mrb[0].mxu0
        %v770 = vadd.f32 0.0, %v769
        %v771 = vpop.f32.mrb[0].mxu0
        %772 = vmatprep.mubr.bf16.mxu0 0
        %773 = vmatmul.mubr.bf16.gmra.mrb[0].mxu0 %v647
        %v774 = vpop.f32.mrb[0].mxu0
        %v775 = vadd.f32 0.0, %v774
        %v776 = vpop.f32.mrb[0].mxu0
        %v777 = vpop.f32.mrb[0].mxu0
        %v778 = vadd.f32 0.0, %v777
        %v779 = vpop.f32.mrb[0].mxu0
        %780 = vmatprep.mubr.bf16.mxu0 0
        %781 = vmatmul.mubr.bf16.gmra.mrb[0].mxu0 %v648
        %v782 = vpop.f32.mrb[0].mxu0
        %v783 = vadd.f32 0.0, %v782
        %v784 = vpop.f32.mrb[0].mxu0
        %v785 = vpop.f32.mrb[0].mxu0
        %v786 = vadd.f32 0.0, %v785
        %v787 = vpop.f32.mrb[0].mxu0
        %788 = vmatprep.mubr.bf16.mxu0 0
        %789 = vmatmul.mubr.bf16.gmra.mrb[0].mxu0 %v649
        %v790 = vpop.f32.mrb[0].mxu0
        %v791 = vadd.f32 0.0, %v790
        %v792 = vpop.f32.mrb[0].mxu0
        %v793 = vpop.f32.mrb[0].mxu0
        %v794 = vadd.f32 0.0, %v793
        %v795 = vpop.f32.mrb[0].mxu0
        %796 = vmatprep.mubr.bf16.mxu0 0
        %797 = vmatmul.mubr.bf16.gmra.mrb[0].mxu0 %v650
        %v798 = vpop.f32.mrb[0].mxu0
        %v799 = vadd.f32 0.0, %v798
        %v800 = vpop.f32.mrb[0].mxu0
        %v801 = vpop.f32.mrb[0].mxu0
        %v802 = vadd.f32 0.0, %v801
        %v803 = vpop.f32.mrb[0].mxu0
        %804 = vmatprep.mubr.bf16.mxu0 0
        %805 = vmatmul.mubr.bf16.gmra.mrb[0].mxu0 %v651
        %v806 = vpop.f32.mrb[0].mxu0
        %v807 = vadd.f32 0.0, %v806
        %v808 = vpop.f32.mrb[0].mxu0
        %v809 = vpop.f32.mrb[0].mxu0
        %v810 = vadd.f32 0.0, %v809
        %v811 = vpop.f32.mrb[0].mxu0
        %812 = vdwg.mxu0
        %v813 = vld [vmem:[#allocation5] sm:$0xf]
        %v814 = vld [vmem:[#allocation5 + $0x4] sm:$0xf]
        %v815 = vld [vmem:[#allocation5 + $0x8] sm:$0xf]
        %v816 = vld [vmem:[#allocation5 + $0xc] sm:$0xf]
        %v817 = vld [vmem:[#allocation5 + $0x10] sm:$0xf]
        %v818 = vld [vmem:[#allocation5 + $0x14] sm:$0xf]
        %v819 = vld [vmem:[#allocation5 + $0x18] sm:$0xf]
        %v820 = vld [vmem:[#allocation5 + $0x1c] sm:$0xf]
        %v821 = vld [vmem:[#allocation5 + $0x20] sm:$0xf]
        %v822 = vld [vmem:[#allocation5 + $0x24] sm:$0xf]
        %v823 = vld [vmem:[#allocation5 + $0x28] sm:$0xf]
        %v824 = vld [vmem:[#allocation5 + $0x2c] sm:$0xf]
        %v825 = vld [vmem:[#allocation5 + $0x30] sm:$0xf]
        %v826 = vld [vmem:[#allocation5 + $0x34] sm:$0xf]
        %v827 = vld [vmem:[#allocation5 + $0x38] sm:$0xf]
        %v828 = vld [vmem:[#allocation5 + $0x3c] sm:$0xf]
        %v829 = vld [vmem:[%s3] sm:$0x1]
        %v830 = vpack.c.bf16 %v754, %v751
        %v831 = vpack.c.bf16 %v762, %v759
        %v832 = vpack.c.bf16 %v770, %v767
        %v833 = vpack.c.bf16 %v778, %v775
        %v834 = vpack.c.bf16 %v786, %v783
        %v835 = vpack.c.bf16 %v794, %v791
        %v836 = vpack.c.bf16 %v802, %v799
        %v837 = vpack.c.bf16 %v810, %v807
        %v839 = vlaneseq
        %v840 = vshrl.u32 %v839, 7
        %v841 = vsub.s32 0, %v840
        %v842 = vrot.slane %v829, %v841
        %v860 = vunpack.c.l.b16 %v813
        %v861 = vunpack.c.l.b16 %v814
        %v862 = vunpack.c.l.b16 %v815
        %v863 = vunpack.c.l.b16 %v816
        %v864 = vunpack.c.l.b16 %v817
        %v865 = vunpack.c.l.b16 %v818
        %v866 = vunpack.c.l.b16 %v819
        %v867 = vunpack.c.l.b16 %v820
        %v868 = vunpack.c.l.b16 %v821
        %v869 = vunpack.c.l.b16 %v822
        %v870 = vunpack.c.l.b16 %v823
        %v871 = vunpack.c.l.b16 %v824
        %v872 = vunpack.c.l.b16 %v825
        %v873 = vunpack.c.l.b16 %v826
        %v874 = vunpack.c.l.b16 %v827
        %v875 = vunpack.c.l.b16 %v828
        %v876 = vpack.c.b16 %v861, %v860
        %v877 = vpack.c.b16 %v863, %v862
        %v878 = vpack.c.b16 %v865, %v864
        %v879 = vpack.c.b16 %v867, %v866
        %v880 = vpack.c.b16 %v869, %v868
        %v881 = vpack.c.b16 %v871, %v870
        %v882 = vpack.c.b16 %v873, %v872
        %v883 = vpack.c.b16 %v875, %v874
        %892 = vmatprep.subr.bf16.mxu0 0
        %893 = vmatpush1.bf16.msra.mxu0 %v876
        %894 = vmatprep.subr.bf16.mxu0 0
        %895 = vmatpush1.bf16.msra.mxu0 %v877
        %896 = vmatprep.subr.bf16.mxu0 0
        %897 = vmatpush1.bf16.msra.mxu0 %v878
        %898 = vmatprep.subr.bf16.mxu0 0
        %899 = vmatpush1.bf16.msra.mxu0 %v879
        %900 = vmatprep.subr.bf16.mxu0 0
        %901 = vmatpush1.bf16.msra.mxu0 %v880
        %902 = vmatprep.subr.bf16.mxu0 0
        %903 = vmatpush1.bf16.msra.mxu0 %v881
        %904 = vmatprep.subr.bf16.mxu0 0
        %905 = vmatpush1.bf16.msra.mxu0 %v882
        %906 = vmatprep.subr.bf16.mxu0 0
        %907 = vmatpush1.bf16.msra.mxu0 %v883
        %908 = vmatprep.subr.bf16.mxu0 0
        %909 = vmatpush1.bf16.msra.mxu0 0
        %910 = vmatprep.subr.bf16.mxu0 0
        %911 = vmatpush1.bf16.msra.mxu0 0
        %912 = vmatprep.subr.bf16.mxu0 0
        %913 = vmatpush1.bf16.msra.mxu0 0
        %914 = vmatprep.subr.bf16.mxu0 0
        %915 = vmatpush1.bf16.msra.mxu0 0
        %916 = vmatprep.subr.bf16.mxu0 0
        %917 = vmatpush1.bf16.msra.mxu0 0
        %918 = vmatprep.subr.bf16.mxu0 0
        %919 = vmatpush1.bf16.msra.mxu0 0
        %920 = vmatprep.subr.bf16.mxu0 0
        %921 = vmatpush1.bf16.msra.mxu0 0
        %922 = vmatprep.subr.bf16.mxu0 0
        %923 = vmatpush1.bf16.msra.mxu0 0
        %924 = vmatprep.mubr.bf16.mxu0 0
        %925 = vmatmul.mubr.bf16.gmra.mrb[0].mxu0 %v830
        %v926 = vpop.f32.mrb[0].mxu0
        %v927 = vadd.f32 %v842, %v926
        %v928 = vpop.f32.mrb[0].mxu0
        %v929 = vpop.f32.mrb[0].mxu0
        %v930 = vadd.f32 %v842, %v929
        %v931 = vpop.f32.mrb[0].mxu0
        %932 = vmatprep.mubr.bf16.mxu0 0
        %933 = vmatmul.mubr.bf16.gmra.mrb[0].mxu0 %v831
        %v934 = vpop.f32.mrb[0].mxu0
        %v935 = vadd.f32 %v842, %v934
        %v936 = vpop.f32.mrb[0].mxu0
        %v937 = vpop.f32.mrb[0].mxu0
        %v938 = vadd.f32 %v842, %v937
        %v939 = vpop.f32.mrb[0].mxu0
        %940 = vmatprep.mubr.bf16.mxu0 0
        %941 = vmatmul.mubr.bf16.gmra.mrb[0].mxu0 %v832
        %v942 = vpop.f32.mrb[0].mxu0
        %v943 = vadd.f32 %v842, %v942
        %v944 = vpop.f32.mrb[0].mxu0
        %v945 = vpop.f32.mrb[0].mxu0
        %v946 = vadd.f32 %v842, %v945
        %v947 = vpop.f32.mrb[0].mxu0
        %948 = vmatprep.mubr.bf16.mxu0 0
        %949 = vmatmul.mubr.bf16.gmra.mrb[0].mxu0 %v833
        %v950 = vpop.f32.mrb[0].mxu0
        %v951 = vadd.f32 %v842, %v950
        %v952 = vpop.f32.mrb[0].mxu0
        %v953 = vpop.f32.mrb[0].mxu0
        %v954 = vadd.f32 %v842, %v953
        %v955 = vpop.f32.mrb[0].mxu0
        %956 = vmatprep.mubr.bf16.mxu0 0
        %957 = vmatmul.mubr.bf16.gmra.mrb[0].mxu0 %v834
        %v958 = vpop.f32.mrb[0].mxu0
        %v959 = vadd.f32 %v842, %v958
        %v960 = vpop.f32.mrb[0].mxu0
        %v961 = vpop.f32.mrb[0].mxu0
        %v962 = vadd.f32 %v842, %v961
        %v963 = vpop.f32.mrb[0].mxu0
        %964 = vmatprep.mubr.bf16.mxu0 0
        %965 = vmatmul.mubr.bf16.gmra.mrb[0].mxu0 %v835
        %v966 = vpop.f32.mrb[0].mxu0
        %v967 = vadd.f32 %v842, %v966
        %v968 = vpop.f32.mrb[0].mxu0
        %v969 = vpop.f32.mrb[0].mxu0
        %v970 = vadd.f32 %v842, %v969
        %v971 = vpop.f32.mrb[0].mxu0
        %972 = vmatprep.mubr.bf16.mxu0 0
        %973 = vmatmul.mubr.bf16.gmra.mrb[0].mxu0 %v836
        %v974 = vpop.f32.mrb[0].mxu0
        %v975 = vadd.f32 %v842, %v974
        %v976 = vpop.f32.mrb[0].mxu0
        %v977 = vpop.f32.mrb[0].mxu0
        %v978 = vadd.f32 %v842, %v977
        %v979 = vpop.f32.mrb[0].mxu0
        %980 = vmatprep.mubr.bf16.mxu0 0
        %981 = vmatmul.mubr.bf16.gmra.mrb[0].mxu0 %v837
        %v982 = vpop.f32.mrb[0].mxu0
        %v983 = vadd.f32 %v842, %v982
        %v984 = vpop.f32.mrb[0].mxu0
        %v985 = vpop.f32.mrb[0].mxu0
        %v986 = vadd.f32 %v842, %v985
        %v987 = vpop.f32.mrb[0].mxu0
        %988 = vdwg.mxu0
        %v989 = vtanh.pop %v927
        %v990 = vtanh.pop %v930
        %v991 = vtanh.pop %v935
        %v992 = vtanh.pop %v938
        %v993 = vtanh.pop %v943
        %v994 = vtanh.pop %v946
        %v995 = vtanh.pop %v951
        %v996 = vtanh.pop %v954
        %v997 = vtanh.pop %v959
        %v998 = vtanh.pop %v962
        %v999 = vtanh.pop %v967
        %v1000 = vtanh.pop %v970
        %v1001 = vtanh.pop %v975
        %v1002 = vtanh.pop %v978
        %v1003 = vtanh.pop %v983
        %v1004 = vtanh.pop %v986
        %v1005 = vld [vmem:[%s4] sm:$0xf]
        %v1006 = vld [vmem:[%s4 + $0x4] sm:$0xf]
        %v1007 = vld [vmem:[%s4 + $0x8] sm:$0xf]
        %v1008 = vld [vmem:[%s4 + $0xc] sm:$0xf]
        %v1009 = vld [vmem:[%s4 + $0x10] sm:$0xf]
        %v1010 = vld [vmem:[%s4 + $0x14] sm:$0xf]
        %v1011 = vld [vmem:[%s4 + $0x18] sm:$0xf]
        %v1012 = vld [vmem:[%s4 + $0x1c] sm:$0xf]
        %v1013 = vld [vmem:[%s4 + $0x20] sm:$0xf]
        %v1014 = vld [vmem:[%s4 + $0x24] sm:$0xf]
        %v1015 = vld [vmem:[%s4 + $0x28] sm:$0xf]
        %v1016 = vld [vmem:[%s4 + $0x2c] sm:$0xf]
        %v1017 = vld [vmem:[%s4 + $0x30] sm:$0xf]
        %v1018 = vld [vmem:[%s4 + $0x34] sm:$0xf]
        %v1019 = vld [vmem:[%s4 + $0x38] sm:$0xf]
        %v1020 = vld [vmem:[%s4 + $0x3c] sm:$0xf]
        %v1021 = vld [vmem:[%s5] sm:$0x1]
        %v1022 = vpack.c.bf16 %v990, %v989
        %v1023 = vpack.c.bf16 %v992, %v991
        %v1024 = vpack.c.bf16 %v994, %v993
        %v1025 = vpack.c.bf16 %v996, %v995
        %v1026 = vpack.c.bf16 %v998, %v997
        %v1027 = vpack.c.bf16 %v1000, %v999
        %v1028 = vpack.c.bf16 %v1002, %v1001
        %v1029 = vpack.c.bf16 %v1004, %v1003
        %v1031 = vlaneseq
        %v1032 = vshrl.u32 %v1031, 7
        %v1033 = vsub.s32 0, %v1032
        %v1034 = vrot.slane %v1021, %v1033
        %v1052 = vunpack.c.l.b16 %v1005
        %v1053 = vunpack.c.l.b16 %v1006
        %v1054 = vunpack.c.l.b16 %v1007
        %v1055 = vunpack.c.l.b16 %v1008
        %v1056 = vunpack.c.l.b16 %v1009
        %v1057 = vunpack.c.l.b16 %v1010
        %v1058 = vunpack.c.l.b16 %v1011
        %v1059 = vunpack.c.l.b16 %v1012
        %v1060 = vunpack.c.l.b16 %v1013
        %v1061 = vunpack.c.l.b16 %v1014
        %v1062 = vunpack.c.l.b16 %v1015
        %v1063 = vunpack.c.l.b16 %v1016
        %v1064 = vunpack.c.l.b16 %v1017
        %v1065 = vunpack.c.l.b16 %v1018
        %v1066 = vunpack.c.l.b16 %v1019
        %v1067 = vunpack.c.l.b16 %v1020
        %v1068 = vpack.c.b16 %v1053, %v1052
        %v1069 = vpack.c.b16 %v1055, %v1054
        %v1070 = vpack.c.b16 %v1057, %v1056
        %v1071 = vpack.c.b16 %v1059, %v1058
        %v1072 = vpack.c.b16 %v1061, %v1060
        %v1073 = vpack.c.b16 %v1063, %v1062
        %v1074 = vpack.c.b16 %v1065, %v1064
        %v1075 = vpack.c.b16 %v1067, %v1066
        %1084 = vmatprep.subr.bf16.mxu0 0
        %1085 = vmatpush1.bf16.msra.mxu0 %v1068
        %1086 = vmatprep.subr.bf16.mxu0 0
        %1087 = vmatpush1.bf16.msra.mxu0 %v1069
        %1088 = vmatprep.subr.bf16.mxu0 0
        %1089 = vmatpush1.bf16.msra.mxu0 %v1070
        %1090 = vmatprep.subr.bf16.mxu0 0
        %1091 = vmatpush1.bf16.msra.mxu0 %v1071
        %1092 = vmatprep.subr.bf16.mxu0 0
        %1093 = vmatpush1.bf16.msra.mxu0 %v1072
        %1094 = vmatprep.subr.bf16.mxu0 0
        %1095 = vmatpush1.bf16.msra.mxu0 %v1073
        %1096 = vmatprep.subr.bf16.mxu0 0
        %1097 = vmatpush1.bf16.msra.mxu0 %v1074
        %1098 = vmatprep.subr.bf16.mxu0 0
        %1099 = vmatpush1.bf16.msra.mxu0 %v1075
        %1100 = vmatprep.subr.bf16.mxu0 0
        %1101 = vmatpush1.bf16.msra.mxu0 0
        %1102 = vmatprep.subr.bf16.mxu0 0
        %1103 = vmatpush1.bf16.msra.mxu0 0
        %1104 = vmatprep.subr.bf16.mxu0 0
        %1105 = vmatpush1.bf16.msra.mxu0 0
        %1106 = vmatprep.subr.bf16.mxu0 0
        %1107 = vmatpush1.bf16.msra.mxu0 0
        %1108 = vmatprep.subr.bf16.mxu0 0
        %1109 = vmatpush1.bf16.msra.mxu0 0
        %1110 = vmatprep.subr.bf16.mxu0 0
        %1111 = vmatpush1.bf16.msra.mxu0 0
        %1112 = vmatprep.subr.bf16.mxu0 0
        %1113 = vmatpush1.bf16.msra.mxu0 0
        %1114 = vmatprep.subr.bf16.mxu0 0
        %1115 = vmatpush1.bf16.msra.mxu0 0
        %1116 = vmatprep.mubr.bf16.mxu0 0
        %1117 = vmatmul.mubr.bf16.gmra.mrb[0].mxu0 %v1022
        %v1118 = vpop.f32.mrb[0].mxu0
        %v1119 = vadd.f32 %v1034, %v1118
        %v1120 = vpop.f32.mrb[0].mxu0
        %v1121 = vpop.f32.mrb[0].mxu0
        %v1122 = vadd.f32 %v1034, %v1121
        %v1123 = vpop.f32.mrb[0].mxu0
        %1124 = vmatprep.mubr.bf16.mxu0 0
        %1125 = vmatmul.mubr.bf16.gmra.mrb[0].mxu0 %v1023
        %v1126 = vpop.f32.mrb[0].mxu0
        %v1127 = vadd.f32 %v1034, %v1126
        %v1128 = vpop.f32.mrb[0].mxu0
        %v1129 = vpop.f32.mrb[0].mxu0
        %v1130 = vadd.f32 %v1034, %v1129
        %v1131 = vpop.f32.mrb[0].mxu0
        %1132 = vmatprep.mubr.bf16.mxu0 0
        %1133 = vmatmul.mubr.bf16.gmra.mrb[0].mxu0 %v1024
        %v1134 = vpop.f32.mrb[0].mxu0
        %v1135 = vadd.f32 %v1034, %v1134
        %v1136 = vpop.f32.mrb[0].mxu0
        %v1137 = vpop.f32.mrb[0].mxu0
        %v1138 = vadd.f32 %v1034, %v1137
        %v1139 = vpop.f32.mrb[0].mxu0
        %1140 = vmatprep.mubr.bf16.mxu0 0
        %1141 = vmatmul.mubr.bf16.gmra.mrb[0].mxu0 %v1025
        %v1142 = vpop.f32.mrb[0].mxu0
        %v1143 = vadd.f32 %v1034, %v1142
        %v1144 = vpop.f32.mrb[0].mxu0
        %v1145 = vpop.f32.mrb[0].mxu0
        %v1146 = vadd.f32 %v1034, %v1145
        %v1147 = vpop.f32.mrb[0].mxu0
        %1148 = vmatprep.mubr.bf16.mxu0 0
        %1149 = vmatmul.mubr.bf16.gmra.mrb[0].mxu0 %v1026
        %v1150 = vpop.f32.mrb[0].mxu0
        %v1151 = vadd.f32 %v1034, %v1150
        %v1152 = vpop.f32.mrb[0].mxu0
        %v1153 = vpop.f32.mrb[0].mxu0
        %v1154 = vadd.f32 %v1034, %v1153
        %v1155 = vpop.f32.mrb[0].mxu0
        %1156 = vmatprep.mubr.bf16.mxu0 0
        %1157 = vmatmul.mubr.bf16.gmra.mrb[0].mxu0 %v1027
        %v1158 = vpop.f32.mrb[0].mxu0
        %v1159 = vadd.f32 %v1034, %v1158
        %v1160 = vpop.f32.mrb[0].mxu0
        %v1161 = vpop.f32.mrb[0].mxu0
        %v1162 = vadd.f32 %v1034, %v1161
        %v1163 = vpop.f32.mrb[0].mxu0
        %1164 = vmatprep.mubr.bf16.mxu0 0
        %1165 = vmatmul.mubr.bf16.gmra.mrb[0].mxu0 %v1028
        %v1166 = vpop.f32.mrb[0].mxu0
        %v1167 = vadd.f32 %v1034, %v1166
        %v1168 = vpop.f32.mrb[0].mxu0
        %v1169 = vpop.f32.mrb[0].mxu0
        %v1170 = vadd.f32 %v1034, %v1169
        %v1171 = vpop.f32.mrb[0].mxu0
        %1172 = vmatprep.mubr.bf16.mxu0 0
        %1173 = vmatmul.mubr.bf16.gmra.mrb[0].mxu0 %v1029
        %v1174 = vpop.f32.mrb[0].mxu0
        %v1175 = vadd.f32 %v1034, %v1174
        %v1176 = vpop.f32.mrb[0].mxu0
        %v1177 = vpop.f32.mrb[0].mxu0
        %v1178 = vadd.f32 %v1034, %v1177
        %v1179 = vpop.f32.mrb[0].mxu0
        %1180 = vdwg.mxu0
        %v1181 = vtanh.pop %v1119
        %v1182 = vtanh.pop %v1122
        %v1183 = vtanh.pop %v1127
        %v1184 = vtanh.pop %v1130
        %v1185 = vtanh.pop %v1135
        %v1186 = vtanh.pop %v1138
        %v1187 = vtanh.pop %v1143
        %v1188 = vtanh.pop %v1146
        %v1189 = vtanh.pop %v1151
        %v1190 = vtanh.pop %v1154
        %v1191 = vtanh.pop %v1159
        %v1192 = vtanh.pop %v1162
        %v1193 = vtanh.pop %v1167
        %v1194 = vtanh.pop %v1170
        %v1195 = vtanh.pop %v1175
        %v1196 = vtanh.pop %v1178
        %s1197 = scalar_lea.vmem %s4, 64
        %v1198 = vld [vmem:[%s1197] sm:$0xf]
        %v1199 = vld [vmem:[%s1197 + $0x4] sm:$0xf]
        %v1200 = vld [vmem:[%s1197 + $0x8] sm:$0xf]
        %v1201 = vld [vmem:[%s1197 + $0xc] sm:$0xf]
        %v1202 = vld [vmem:[%s1197 + $0x10] sm:$0xf]
        %v1203 = vld [vmem:[%s1197 + $0x14] sm:$0xf]
        %v1204 = vld [vmem:[%s1197 + $0x18] sm:$0xf]
        %v1205 = vld [vmem:[%s1197 + $0x1c] sm:$0xf]
        %v1206 = vld [vmem:[%s1197 + $0x20] sm:$0xf]
        %v1207 = vld [vmem:[%s1197 + $0x24] sm:$0xf]
        %v1208 = vld [vmem:[%s1197 + $0x28] sm:$0xf]
        %v1209 = vld [vmem:[%s1197 + $0x2c] sm:$0xf]
        %v1210 = vld [vmem:[%s1197 + $0x30] sm:$0xf]
        %v1211 = vld [vmem:[%s1197 + $0x34] sm:$0xf]
        %v1212 = vld [vmem:[%s1197 + $0x38] sm:$0xf]
        %v1213 = vld [vmem:[%s1197 + $0x3c] sm:$0xf]
        %s1214 = scalar_lea.vmem %s5, 1
        %v1215 = vld [vmem:[%s1214] sm:$0x1]
        %v1216 = vpack.c.bf16 %v1182, %v1181
        %v1217 = vpack.c.bf16 %v1184, %v1183
        %v1218 = vpack.c.bf16 %v1186, %v1185
        %v1219 = vpack.c.bf16 %v1188, %v1187
        %v1220 = vpack.c.bf16 %v1190, %v1189
        %v1221 = vpack.c.bf16 %v1192, %v1191
        %v1222 = vpack.c.bf16 %v1194, %v1193
        %v1223 = vpack.c.bf16 %v1196, %v1195
        %v1225 = vlaneseq
        %v1226 = vshrl.u32 %v1225, 7
        %v1227 = vsub.s32 0, %v1226
        %v1228 = vrot.slane %v1215, %v1227
        %v1246 = vunpack.c.l.b16 %v1198
        %v1247 = vunpack.c.l.b16 %v1199
        %v1248 = vunpack.c.l.b16 %v1200
        %v1249 = vunpack.c.l.b16 %v1201
        %v1250 = vunpack.c.l.b16 %v1202
        %v1251 = vunpack.c.l.b16 %v1203
        %v1252 = vunpack.c.l.b16 %v1204
        %v1253 = vunpack.c.l.b16 %v1205
        %v1254 = vunpack.c.l.b16 %v1206
        %v1255 = vunpack.c.l.b16 %v1207
        %v1256 = vunpack.c.l.b16 %v1208
        %v1257 = vunpack.c.l.b16 %v1209
        %v1258 = vunpack.c.l.b16 %v1210
        %v1259 = vunpack.c.l.b16 %v1211
        %v1260 = vunpack.c.l.b16 %v1212
        %v1261 = vunpack.c.l.b16 %v1213
        %v1262 = vpack.c.b16 %v1247, %v1246
        %v1263 = vpack.c.b16 %v1249, %v1248
        %v1264 = vpack.c.b16 %v1251, %v1250
        %v1265 = vpack.c.b16 %v1253, %v1252
        %v1266 = vpack.c.b16 %v1255, %v1254
        %v1267 = vpack.c.b16 %v1257, %v1256
        %v1268 = vpack.c.b16 %v1259, %v1258
        %v1269 = vpack.c.b16 %v1261, %v1260
        %1278 = vmatprep.subr.bf16.mxu0 0
        %1279 = vmatpush1.bf16.msra.mxu0 %v1262
        %1280 = vmatprep.subr.bf16.mxu0 0
        %1281 = vmatpush1.bf16.msra.mxu0 %v1263
        %1282 = vmatprep.subr.bf16.mxu0 0
        %1283 = vmatpush1.bf16.msra.mxu0 %v1264
        %1284 = vmatprep.subr.bf16.mxu0 0
        %1285 = vmatpush1.bf16.msra.mxu0 %v1265
        %1286 = vmatprep.subr.bf16.mxu0 0
        %1287 = vmatpush1.bf16.msra.mxu0 %v1266
        %1288 = vmatprep.subr.bf16.mxu0 0
        %1289 = vmatpush1.bf16.msra.mxu0 %v1267
        %1290 = vmatprep.subr.bf16.mxu0 0
        %1291 = vmatpush1.bf16.msra.mxu0 %v1268
        %1292 = vmatprep.subr.bf16.mxu0 0
        %1293 = vmatpush1.bf16.msra.mxu0 %v1269
        %1294 = vmatprep.subr.bf16.mxu0 0
        %1295 = vmatpush1.bf16.msra.mxu0 0
        %1296 = vmatprep.subr.bf16.mxu0 0
        %1297 = vmatpush1.bf16.msra.mxu0 0
        %1298 = vmatprep.subr.bf16.mxu0 0
        %1299 = vmatpush1.bf16.msra.mxu0 0
        %1300 = vmatprep.subr.bf16.mxu0 0
        %1301 = vmatpush1.bf16.msra.mxu0 0
        %1302 = vmatprep.subr.bf16.mxu0 0
        %1303 = vmatpush1.bf16.msra.mxu0 0
        %1304 = vmatprep.subr.bf16.mxu0 0
        %1305 = vmatpush1.bf16.msra.mxu0 0
        %1306 = vmatprep.subr.bf16.mxu0 0
        %1307 = vmatpush1.bf16.msra.mxu0 0
        %1308 = vmatprep.subr.bf16.mxu0 0
        %1309 = vmatpush1.bf16.msra.mxu0 0
        %1310 = vmatprep.mubr.bf16.mxu0 0
        %1311 = vmatmul.mubr.bf16.gmra.mrb[0].mxu0 %v1216
        %v1312 = vpop.f32.mrb[0].mxu0
        %v1313 = vadd.f32 %v1228, %v1312
        %v1314 = vpop.f32.mrb[0].mxu0
        %v1315 = vpop.f32.mrb[0].mxu0
        %v1316 = vadd.f32 %v1228, %v1315
        %v1317 = vpop.f32.mrb[0].mxu0
        %1318 = vmatprep.mubr.bf16.mxu0 0
        %1319 = vmatmul.mubr.bf16.gmra.mrb[0].mxu0 %v1217
        %v1320 = vpop.f32.mrb[0].mxu0
        %v1321 = vadd.f32 %v1228, %v1320
        %v1322 = vpop.f32.mrb[0].mxu0
        %v1323 = vpop.f32.mrb[0].mxu0
        %v1324 = vadd.f32 %v1228, %v1323
        %v1325 = vpop.f32.mrb[0].mxu0
        %1326 = vmatprep.mubr.bf16.mxu0 0
        %1327 = vmatmul.mubr.bf16.gmra.mrb[0].mxu0 %v1218
        %v1328 = vpop.f32.mrb[0].mxu0
        %v1329 = vadd.f32 %v1228, %v1328
        %v1330 = vpop.f32.mrb[0].mxu0
        %v1331 = vpop.f32.mrb[0].mxu0
        %v1332 = vadd.f32 %v1228, %v1331
        %v1333 = vpop.f32.mrb[0].mxu0
        %1334 = vmatprep.mubr.bf16.mxu0 0
        %1335 = vmatmul.mubr.bf16.gmra.mrb[0].mxu0 %v1219
        %v1336 = vpop.f32.mrb[0].mxu0
        %v1337 = vadd.f32 %v1228, %v1336
        %v1338 = vpop.f32.mrb[0].mxu0
        %v1339 = vpop.f32.mrb[0].mxu0
        %v1340 = vadd.f32 %v1228, %v1339
        %v1341 = vpop.f32.mrb[0].mxu0
        %1342 = vmatprep.mubr.bf16.mxu0 0
        %1343 = vmatmul.mubr.bf16.gmra.mrb[0].mxu0 %v1220
        %v1344 = vpop.f32.mrb[0].mxu0
        %v1345 = vadd.f32 %v1228, %v1344
        %v1346 = vpop.f32.mrb[0].mxu0
        %v1347 = vpop.f32.mrb[0].mxu0
        %v1348 = vadd.f32 %v1228, %v1347
        %v1349 = vpop.f32.mrb[0].mxu0
        %1350 = vmatprep.mubr.bf16.mxu0 0
        %1351 = vmatmul.mubr.bf16.gmra.mrb[0].mxu0 %v1221
        %v1352 = vpop.f32.mrb[0].mxu0
        %v1353 = vadd.f32 %v1228, %v1352
        %v1354 = vpop.f32.mrb[0].mxu0
        %v1355 = vpop.f32.mrb[0].mxu0
        %v1356 = vadd.f32 %v1228, %v1355
        %v1357 = vpop.f32.mrb[0].mxu0
        %1358 = vmatprep.mubr.bf16.mxu0 0
        %1359 = vmatmul.mubr.bf16.gmra.mrb[0].mxu0 %v1222
        %v1360 = vpop.f32.mrb[0].mxu0
        %v1361 = vadd.f32 %v1228, %v1360
        %v1362 = vpop.f32.mrb[0].mxu0
        %v1363 = vpop.f32.mrb[0].mxu0
        %v1364 = vadd.f32 %v1228, %v1363
        %v1365 = vpop.f32.mrb[0].mxu0
        %1366 = vmatprep.mubr.bf16.mxu0 0
        %1367 = vmatmul.mubr.bf16.gmra.mrb[0].mxu0 %v1223
        %v1368 = vpop.f32.mrb[0].mxu0
        %v1369 = vadd.f32 %v1228, %v1368
        %v1370 = vpop.f32.mrb[0].mxu0
        %v1371 = vpop.f32.mrb[0].mxu0
        %v1372 = vadd.f32 %v1228, %v1371
        %v1373 = vpop.f32.mrb[0].mxu0
        %1374 = vdwg.mxu0
        %v1375 = vtanh.pop %v1313
        %v1376 = vtanh.pop %v1316
        %v1377 = vtanh.pop %v1321
        %v1378 = vtanh.pop %v1324
        %v1379 = vtanh.pop %v1329
        %v1380 = vtanh.pop %v1332
        %v1381 = vtanh.pop %v1337
        %v1382 = vtanh.pop %v1340
        %v1383 = vtanh.pop %v1345
        %v1384 = vtanh.pop %v1348
        %v1385 = vtanh.pop %v1353
        %v1386 = vtanh.pop %v1356
        %v1387 = vtanh.pop %v1361
        %v1388 = vtanh.pop %v1364
        %v1389 = vtanh.pop %v1369
        %v1390 = vtanh.pop %v1372
        %v1391 = vld [vmem:[%s6] sm:$0xf]
        %v1392 = vld [vmem:[%s6 + $0x4] sm:$0xf]
        %v1393 = vld [vmem:[%s6 + $0x8] sm:$0xf]
        %v1394 = vld [vmem:[%s6 + $0xc] sm:$0xf]
        %v1395 = vld [vmem:[%s6 + $0x10] sm:$0xf]
        %v1396 = vld [vmem:[%s6 + $0x14] sm:$0xf]
        %v1397 = vld [vmem:[%s6 + $0x18] sm:$0xf]
        %v1398 = vld [vmem:[%s6 + $0x1c] sm:$0xf]
        %v1399 = vld [vmem:[%s6 + $0x20] sm:$0xf]
        %v1400 = vld [vmem:[%s6 + $0x24] sm:$0xf]
        %v1401 = vld [vmem:[%s6 + $0x28] sm:$0xf]
        %v1402 = vld [vmem:[%s6 + $0x2c] sm:$0xf]
        %v1403 = vld [vmem:[%s6 + $0x30] sm:$0xf]
        %v1404 = vld [vmem:[%s6 + $0x34] sm:$0xf]
        %v1405 = vld [vmem:[%s6 + $0x38] sm:$0xf]
        %v1406 = vld [vmem:[%s6 + $0x3c] sm:$0xf]
        %v1407 = vld [vmem:[%s7] sm:$0x1]
        %v1408 = vpack.c.bf16 %v1376, %v1375
        %v1409 = vpack.c.bf16 %v1378, %v1377
        %v1410 = vpack.c.bf16 %v1380, %v1379
        %v1411 = vpack.c.bf16 %v1382, %v1381
        %v1412 = vpack.c.bf16 %v1384, %v1383
        %v1413 = vpack.c.bf16 %v1386, %v1385
        %v1414 = vpack.c.bf16 %v1388, %v1387
        %v1415 = vpack.c.bf16 %v1390, %v1389
        %v1417 = vlaneseq
        %v1418 = vshrl.u32 %v1417, 7
        %v1419 = vsub.s32 0, %v1418
        %v1420 = vrot.slane %v1407, %v1419
        %v1438 = vunpack.c.l.b16 %v1391
        %v1439 = vunpack.c.l.b16 %v1392
        %v1440 = vunpack.c.l.b16 %v1393
        %v1441 = vunpack.c.l.b16 %v1394
        %v1442 = vunpack.c.l.b16 %v1395
        %v1443 = vunpack.c.l.b16 %v1396
        %v1444 = vunpack.c.l.b16 %v1397
        %v1445 = vunpack.c.l.b16 %v1398
        %v1446 = vunpack.c.l.b16 %v1399
        %v1447 = vunpack.c.l.b16 %v1400
        %v1448 = vunpack.c.l.b16 %v1401
        %v1449 = vunpack.c.l.b16 %v1402
        %v1450 = vunpack.c.l.b16 %v1403
        %v1451 = vunpack.c.l.b16 %v1404
        %v1452 = vunpack.c.l.b16 %v1405
        %v1453 = vunpack.c.l.b16 %v1406
        %v1454 = vpack.c.b16 %v1439, %v1438
        %v1455 = vpack.c.b16 %v1441, %v1440
        %v1456 = vpack.c.b16 %v1443, %v1442
        %v1457 = vpack.c.b16 %v1445, %v1444
        %v1458 = vpack.c.b16 %v1447, %v1446
        %v1459 = vpack.c.b16 %v1449, %v1448
        %v1460 = vpack.c.b16 %v1451, %v1450
        %v1461 = vpack.c.b16 %v1453, %v1452
        %1470 = vmatprep.subr.bf16.mxu0 0
        %1471 = vmatpush1.bf16.msra.mxu0 %v1454
        %1472 = vmatprep.subr.bf16.mxu0 0
        %1473 = vmatpush1.bf16.msra.mxu0 %v1455
        %1474 = vmatprep.subr.bf16.mxu0 0
        %1475 = vmatpush1.bf16.msra.mxu0 %v1456
        %1476 = vmatprep.subr.bf16.mxu0 0
        %1477 = vmatpush1.bf16.msra.mxu0 %v1457
        %1478 = vmatprep.subr.bf16.mxu0 0
        %1479 = vmatpush1.bf16.msra.mxu0 %v1458
        %1480 = vmatprep.subr.bf16.mxu0 0
        %1481 = vmatpush1.bf16.msra.mxu0 %v1459
        %1482 = vmatprep.subr.bf16.mxu0 0
        %1483 = vmatpush1.bf16.msra.mxu0 %v1460
        %1484 = vmatprep.subr.bf16.mxu0 0
        %1485 = vmatpush1.bf16.msra.mxu0 %v1461
        %1486 = vmatprep.subr.bf16.mxu0 0
        %1487 = vmatpush1.bf16.msra.mxu0 0
        %1488 = vmatprep.subr.bf16.mxu0 0
        %1489 = vmatpush1.bf16.msra.mxu0 0
        %1490 = vmatprep.subr.bf16.mxu0 0
        %1491 = vmatpush1.bf16.msra.mxu0 0
        %1492 = vmatprep.subr.bf16.mxu0 0
        %1493 = vmatpush1.bf16.msra.mxu0 0
        %1494 = vmatprep.subr.bf16.mxu0 0
        %1495 = vmatpush1.bf16.msra.mxu0 0
        %1496 = vmatprep.subr.bf16.mxu0 0
        %1497 = vmatpush1.bf16.msra.mxu0 0
        %1498 = vmatprep.subr.bf16.mxu0 0
        %1499 = vmatpush1.bf16.msra.mxu0 0
        %1500 = vmatprep.subr.bf16.mxu0 0
        %1501 = vmatpush1.bf16.msra.mxu0 0
        %1502 = vmatprep.mubr.bf16.mxu0 0
        %1503 = vmatmul.mubr.bf16.gmra.mrb[0].mxu0 %v1408
        %v1504 = vpop.f32.mrb[0].mxu0
        %v1505 = vadd.f32 %v1420, %v1504
        %v1506 = vpop.f32.mrb[0].mxu0
        %v1507 = vpop.f32.mrb[0].mxu0
        %v1508 = vadd.f32 %v1420, %v1507
        %v1509 = vpop.f32.mrb[0].mxu0
        %1510 = vmatprep.mubr.bf16.mxu0 0
        %1511 = vmatmul.mubr.bf16.gmra.mrb[0].mxu0 %v1409
        %v1512 = vpop.f32.mrb[0].mxu0
        %v1513 = vadd.f32 %v1420, %v1512
        %v1514 = vpop.f32.mrb[0].mxu0
        %v1515 = vpop.f32.mrb[0].mxu0
        %v1516 = vadd.f32 %v1420, %v1515
        %v1517 = vpop.f32.mrb[0].mxu0
        %1518 = vmatprep.mubr.bf16.mxu0 0
        %1519 = vmatmul.mubr.bf16.gmra.mrb[0].mxu0 %v1410
        %v1520 = vpop.f32.mrb[0].mxu0
        %v1521 = vadd.f32 %v1420, %v1520
        %v1522 = vpop.f32.mrb[0].mxu0
        %v1523 = vpop.f32.mrb[0].mxu0
        %v1524 = vadd.f32 %v1420, %v1523
        %v1525 = vpop.f32.mrb[0].mxu0
        %1526 = vmatprep.mubr.bf16.mxu0 0
        %1527 = vmatmul.mubr.bf16.gmra.mrb[0].mxu0 %v1411
        %v1528 = vpop.f32.mrb[0].mxu0
        %v1529 = vadd.f32 %v1420, %v1528
        %v1530 = vpop.f32.mrb[0].mxu0
        %v1531 = vpop.f32.mrb[0].mxu0
        %v1532 = vadd.f32 %v1420, %v1531
        %v1533 = vpop.f32.mrb[0].mxu0
        %1534 = vmatprep.mubr.bf16.mxu0 0
        %1535 = vmatmul.mubr.bf16.gmra.mrb[0].mxu0 %v1412
        %v1536 = vpop.f32.mrb[0].mxu0
        %v1537 = vadd.f32 %v1420, %v1536
        %v1538 = vpop.f32.mrb[0].mxu0
        %v1539 = vpop.f32.mrb[0].mxu0
        %v1540 = vadd.f32 %v1420, %v1539
        %v1541 = vpop.f32.mrb[0].mxu0
        %1542 = vmatprep.mubr.bf16.mxu0 0
        %1543 = vmatmul.mubr.bf16.gmra.mrb[0].mxu0 %v1413
        %v1544 = vpop.f32.mrb[0].mxu0
        %v1545 = vadd.f32 %v1420, %v1544
        %v1546 = vpop.f32.mrb[0].mxu0
        %v1547 = vpop.f32.mrb[0].mxu0
        %v1548 = vadd.f32 %v1420, %v1547
        %v1549 = vpop.f32.mrb[0].mxu0
        %1550 = vmatprep.mubr.bf16.mxu0 0
        %1551 = vmatmul.mubr.bf16.gmra.mrb[0].mxu0 %v1414
        %v1552 = vpop.f32.mrb[0].mxu0
        %v1553 = vadd.f32 %v1420, %v1552
        %v1554 = vpop.f32.mrb[0].mxu0
        %v1555 = vpop.f32.mrb[0].mxu0
        %v1556 = vadd.f32 %v1420, %v1555
        %v1557 = vpop.f32.mrb[0].mxu0
        %1558 = vmatprep.mubr.bf16.mxu0 0
        %1559 = vmatmul.mubr.bf16.gmra.mrb[0].mxu0 %v1415
        %v1560 = vpop.f32.mrb[0].mxu0
        %v1561 = vadd.f32 %v1420, %v1560
        %v1562 = vpop.f32.mrb[0].mxu0
        %v1563 = vpop.f32.mrb[0].mxu0
        %v1564 = vadd.f32 %v1420, %v1563
        %v1565 = vpop.f32.mrb[0].mxu0
        %1566 = vdwg.mxu0
        %v1567 = vtanh.pop %v1505
        %v1568 = vtanh.pop %v1508
        %v1569 = vtanh.pop %v1513
        %v1570 = vtanh.pop %v1516
        %v1571 = vtanh.pop %v1521
        %v1572 = vtanh.pop %v1524
        %v1573 = vtanh.pop %v1529
        %v1574 = vtanh.pop %v1532
        %v1575 = vtanh.pop %v1537
        %v1576 = vtanh.pop %v1540
        %v1577 = vtanh.pop %v1545
        %v1578 = vtanh.pop %v1548
        %v1579 = vtanh.pop %v1553
        %v1580 = vtanh.pop %v1556
        %v1581 = vtanh.pop %v1561
        %v1582 = vtanh.pop %v1564
        %s1583 = scalar_lea.vmem %s6, 64
        %v1584 = vld [vmem:[%s1583] sm:$0xf]
        %v1585 = vld [vmem:[%s1583 + $0x4] sm:$0xf]
        %v1586 = vld [vmem:[%s1583 + $0x8] sm:$0xf]
        %v1587 = vld [vmem:[%s1583 + $0xc] sm:$0xf]
        %v1588 = vld [vmem:[%s1583 + $0x10] sm:$0xf]
        %v1589 = vld [vmem:[%s1583 + $0x14] sm:$0xf]
        %v1590 = vld [vmem:[%s1583 + $0x18] sm:$0xf]
        %v1591 = vld [vmem:[%s1583 + $0x1c] sm:$0xf]
        %v1592 = vld [vmem:[%s1583 + $0x20] sm:$0xf]
        %v1593 = vld [vmem:[%s1583 + $0x24] sm:$0xf]
        %v1594 = vld [vmem:[%s1583 + $0x28] sm:$0xf]
        %v1595 = vld [vmem:[%s1583 + $0x2c] sm:$0xf]
        %v1596 = vld [vmem:[%s1583 + $0x30] sm:$0xf]
        %v1597 = vld [vmem:[%s1583 + $0x34] sm:$0xf]
        %v1598 = vld [vmem:[%s1583 + $0x38] sm:$0xf]
        %v1599 = vld [vmem:[%s1583 + $0x3c] sm:$0xf]
        %s1600 = scalar_lea.vmem %s7, 1
        %v1601 = vld [vmem:[%s1600] sm:$0x1]
        %v1602 = vpack.c.bf16 %v1568, %v1567
        %v1603 = vpack.c.bf16 %v1570, %v1569
        %v1604 = vpack.c.bf16 %v1572, %v1571
        %v1605 = vpack.c.bf16 %v1574, %v1573
        %v1606 = vpack.c.bf16 %v1576, %v1575
        %v1607 = vpack.c.bf16 %v1578, %v1577
        %v1608 = vpack.c.bf16 %v1580, %v1579
        %v1609 = vpack.c.bf16 %v1582, %v1581
        %v1611 = vlaneseq
        %v1612 = vshrl.u32 %v1611, 7
        %v1613 = vsub.s32 0, %v1612
        %v1614 = vrot.slane %v1601, %v1613
        %v1632 = vunpack.c.l.b16 %v1584
        %v1633 = vunpack.c.l.b16 %v1585
        %v1634 = vunpack.c.l.b16 %v1586
        %v1635 = vunpack.c.l.b16 %v1587
        %v1636 = vunpack.c.l.b16 %v1588
        %v1637 = vunpack.c.l.b16 %v1589
        %v1638 = vunpack.c.l.b16 %v1590
        %v1639 = vunpack.c.l.b16 %v1591
        %v1640 = vunpack.c.l.b16 %v1592
        %v1641 = vunpack.c.l.b16 %v1593
        %v1642 = vunpack.c.l.b16 %v1594
        %v1643 = vunpack.c.l.b16 %v1595
        %v1644 = vunpack.c.l.b16 %v1596
        %v1645 = vunpack.c.l.b16 %v1597
        %v1646 = vunpack.c.l.b16 %v1598
        %v1647 = vunpack.c.l.b16 %v1599
        %v1648 = vpack.c.b16 %v1633, %v1632
        %v1649 = vpack.c.b16 %v1635, %v1634
        %v1650 = vpack.c.b16 %v1637, %v1636
        %v1651 = vpack.c.b16 %v1639, %v1638
        %v1652 = vpack.c.b16 %v1641, %v1640
        %v1653 = vpack.c.b16 %v1643, %v1642
        %v1654 = vpack.c.b16 %v1645, %v1644
        %v1655 = vpack.c.b16 %v1647, %v1646
        %1664 = vmatprep.subr.bf16.mxu0 0
        %1665 = vmatpush1.bf16.msra.mxu0 %v1648
        %1666 = vmatprep.subr.bf16.mxu0 0
        %1667 = vmatpush1.bf16.msra.mxu0 %v1649
        %1668 = vmatprep.subr.bf16.mxu0 0
        %1669 = vmatpush1.bf16.msra.mxu0 %v1650
        %1670 = vmatprep.subr.bf16.mxu0 0
        %1671 = vmatpush1.bf16.msra.mxu0 %v1651
        %1672 = vmatprep.subr.bf16.mxu0 0
        %1673 = vmatpush1.bf16.msra.mxu0 %v1652
        %1674 = vmatprep.subr.bf16.mxu0 0
        %1675 = vmatpush1.bf16.msra.mxu0 %v1653
        %1676 = vmatprep.subr.bf16.mxu0 0
        %1677 = vmatpush1.bf16.msra.mxu0 %v1654
        %1678 = vmatprep.subr.bf16.mxu0 0
        %1679 = vmatpush1.bf16.msra.mxu0 %v1655
        %1680 = vmatprep.subr.bf16.mxu0 0
        %1681 = vmatpush1.bf16.msra.mxu0 0
        %1682 = vmatprep.subr.bf16.mxu0 0
        %1683 = vmatpush1.bf16.msra.mxu0 0
        %1684 = vmatprep.subr.bf16.mxu0 0
        %1685 = vmatpush1.bf16.msra.mxu0 0
        %1686 = vmatprep.subr.bf16.mxu0 0
        %1687 = vmatpush1.bf16.msra.mxu0 0
        %1688 = vmatprep.subr.bf16.mxu0 0
        %1689 = vmatpush1.bf16.msra.mxu0 0
        %1690 = vmatprep.subr.bf16.mxu0 0
        %1691 = vmatpush1.bf16.msra.mxu0 0
        %1692 = vmatprep.subr.bf16.mxu0 0
        %1693 = vmatpush1.bf16.msra.mxu0 0
        %1694 = vmatprep.subr.bf16.mxu0 0
        %1695 = vmatpush1.bf16.msra.mxu0 0
        %1696 = vmatprep.mubr.bf16.mxu0 0
        %1697 = vmatmul.mubr.bf16.gmra.mrb[0].mxu0 %v1602
        %v1698 = vpop.f32.mrb[0].mxu0
        %v1699 = vadd.f32 %v1614, %v1698
        %v1700 = vpop.f32.mrb[0].mxu0
        %v1701 = vpop.f32.mrb[0].mxu0
        %v1702 = vadd.f32 %v1614, %v1701
        %v1703 = vpop.f32.mrb[0].mxu0
        %1704 = vmatprep.mubr.bf16.mxu0 0
        %1705 = vmatmul.mubr.bf16.gmra.mrb[0].mxu0 %v1603
        %v1706 = vpop.f32.mrb[0].mxu0
        %v1707 = vadd.f32 %v1614, %v1706
        %v1708 = vpop.f32.mrb[0].mxu0
        %v1709 = vpop.f32.mrb[0].mxu0
        %v1710 = vadd.f32 %v1614, %v1709
        %v1711 = vpop.f32.mrb[0].mxu0
        %1712 = vmatprep.mubr.bf16.mxu0 0
        %1713 = vmatmul.mubr.bf16.gmra.mrb[0].mxu0 %v1604
        %v1714 = vpop.f32.mrb[0].mxu0
        %v1715 = vadd.f32 %v1614, %v1714
        %v1716 = vpop.f32.mrb[0].mxu0
        %v1717 = vpop.f32.mrb[0].mxu0
        %v1718 = vadd.f32 %v1614, %v1717
        %v1719 = vpop.f32.mrb[0].mxu0
        %1720 = vmatprep.mubr.bf16.mxu0 0
        %1721 = vmatmul.mubr.bf16.gmra.mrb[0].mxu0 %v1605
        %v1722 = vpop.f32.mrb[0].mxu0
        %v1723 = vadd.f32 %v1614, %v1722
        %v1724 = vpop.f32.mrb[0].mxu0
        %v1725 = vpop.f32.mrb[0].mxu0
        %v1726 = vadd.f32 %v1614, %v1725
        %v1727 = vpop.f32.mrb[0].mxu0
        %1728 = vmatprep.mubr.bf16.mxu0 0
        %1729 = vmatmul.mubr.bf16.gmra.mrb[0].mxu0 %v1606
        %v1730 = vpop.f32.mrb[0].mxu0
        %v1731 = vadd.f32 %v1614, %v1730
        %v1732 = vpop.f32.mrb[0].mxu0
        %v1733 = vpop.f32.mrb[0].mxu0
        %v1734 = vadd.f32 %v1614, %v1733
        %v1735 = vpop.f32.mrb[0].mxu0
        %1736 = vmatprep.mubr.bf16.mxu0 0
        %1737 = vmatmul.mubr.bf16.gmra.mrb[0].mxu0 %v1607
        %v1738 = vpop.f32.mrb[0].mxu0
        %v1739 = vadd.f32 %v1614, %v1738
        %v1740 = vpop.f32.mrb[0].mxu0
        %v1741 = vpop.f32.mrb[0].mxu0
        %v1742 = vadd.f32 %v1614, %v1741
        %v1743 = vpop.f32.mrb[0].mxu0
        %1744 = vmatprep.mubr.bf16.mxu0 0
        %1745 = vmatmul.mubr.bf16.gmra.mrb[0].mxu0 %v1608
        %v1746 = vpop.f32.mrb[0].mxu0
        %v1747 = vadd.f32 %v1614, %v1746
        %v1748 = vpop.f32.mrb[0].mxu0
        %v1749 = vpop.f32.mrb[0].mxu0
        %v1750 = vadd.f32 %v1614, %v1749
        %v1751 = vpop.f32.mrb[0].mxu0
        %1752 = vmatprep.mubr.bf16.mxu0 0
        %1753 = vmatmul.mubr.bf16.gmra.mrb[0].mxu0 %v1609
        %v1754 = vpop.f32.mrb[0].mxu0
        %v1755 = vadd.f32 %v1614, %v1754
        %v1756 = vpop.f32.mrb[0].mxu0
        %v1757 = vpop.f32.mrb[0].mxu0
        %v1758 = vadd.f32 %v1614, %v1757
        %v1759 = vpop.f32.mrb[0].mxu0
        %1760 = vdwg.mxu0
        %1761 = vst [vmem:[%s329] sm:$0xff] %v1699
        %1762 = vst [vmem:[%s329 + $0x8] sm:$0xff] %v1702
        %1763 = vst [vmem:[%s329 + $0x10] sm:$0xff] %v1707
        %1764 = vst [vmem:[%s329 + $0x18] sm:$0xff] %v1710
        %1765 = vst [vmem:[%s329 + $0x20] sm:$0xff] %v1715
        %1766 = vst [vmem:[%s329 + $0x28] sm:$0xff] %v1718
        %1767 = vst [vmem:[%s329 + $0x30] sm:$0xff] %v1723
        %1768 = vst [vmem:[%s329 + $0x38] sm:$0xff] %v1726
        %1769 = vst [vmem:[%s329 + $0x40] sm:$0xff] %v1731
        %1770 = vst [vmem:[%s329 + $0x48] sm:$0xff] %v1734
        %1771 = vst [vmem:[%s329 + $0x50] sm:$0xff] %v1739
        %1772 = vst [vmem:[%s329 + $0x58] sm:$0xff] %v1742
        %1773 = vst [vmem:[%s329 + $0x60] sm:$0xff] %v1747
        %1774 = vst [vmem:[%s329 + $0x68] sm:$0xff] %v1750
        %1775 = vst [vmem:[%s329 + $0x70] sm:$0xff] %v1755
        %1776 = vst [vmem:[%s329 + $0x78] sm:$0xff] %v1758
        %s1777 = sand.u32 %s205, 1
        %s1778 = scalar_lea.sflag [#allocation4], %s1777
        %s1779 = sand.u32 %s205, 1
        %s1780 = smul.addr %s1779, 128
        %s1781 = scalar_lea.vmem [#allocation7], %s1780
        // Predicated region
        $region61: #{tpu_custom_call.1} parent=51 // pred_check
          %p1782 = pneg %p215
        $region62: #{tpu_custom_call.1} parent=51 // pred_check_branch
          %1784 = sbr.rel (%p1782) target = $region64
        $region63: #{tpu_custom_call.1} parent=51 // pred_region
          %s1785 = smul.u32 16, %s24
          %s1787 = ssub.s32 2048, 2048
          %1788 = vsyncadd %s1778, %s1787
          %s1789 = smul.addr %s1785, 128
          %s1790 = scalar_lea.hbm %s8, %s1789
          %s1791 = sshll.u32 %s1781, 4
          %s1792 = int_to_ptr.vmem [resolvable:$true] %s1791
          %1797 = dma.vmem_to_hbm [thread:$0]  %s1792, 2048, %s1790, %s1778, 128, 128, 8
        $region64: #{tpu_custom_call.1} parent=51 // pred_fallthru
          _
      $region52: #{tpu_custom_call.1} parent=5 // pred_fallthru
        _
      %p1798 = scmp.le.s32.totalorder 2, %s19
      // Predicated region
      $region65: #{tpu_custom_call.1} parent=5 // pred_check
        %p1799 = pneg %p1798
      $region66: #{tpu_custom_call.1} parent=5 // pred_check_branch
        %1801 = sbr.rel (%p1799) target = $region68
      $region67: #{tpu_custom_call.1} parent=5 // pred_region
        %s1802 = ssub.s32 %s19, 2
        // Predicated region
        $region69: #{tpu_custom_call.1} parent=67 // pred_check
          %p1803 = pneg %p221
        $region70: #{tpu_custom_call.1} parent=67 // pred_check_branch
          %1805 = sbr.rel (%p1803) target = $region72
        $region71: #{tpu_custom_call.1} parent=67 // pred_region
          %s1806 = sand.u32 %s206, 1
          %s1807 = scalar_lea.sflag [#allocation4], %s1806
          %s1808 = sand.u32 %s206, 1
          %s1809 = smul.addr %s1808, 128
          %s1810 = scalar_lea.vmem [#allocation7], %s1809
          %1811 = dma.done %s1807, 2048
        $region72: #{tpu_custom_call.1} parent=67 // pred_fallthru
          _
      $region68: #{tpu_custom_call.1} parent=5 // pred_fallthru
        _
    $region6: #{tpu_custom_call.1} parent=1 // loop_footer
      %s23 = sadd.s32 1, %s19
    $region7: #{tpu_custom_call.1} parent=1 // loop_footer_branch
      %18 = sbr.rel target = $region3
    $region8: #{tpu_custom_call.1} parent=1 // loop_exit
      _
    %1812 = vsyncpa [#allocation3], 1
    %s1813 = scalar_lea.sflag [#allocation3], 1
    %1814 = vsyncpa %s1813, 1
    %1815 = vsyncpa [#allocation6], 1
    %1816 = vsyncpa [#allocation4], 1
    %s1817 = scalar_lea.sflag [#allocation4], 1
    %1818 = vsyncpa %s1817, 1

</llo_original>
